<compile_context>
chip_gen: v7x
topology: tpu7x:2x2x1
jax: 0.10.0
libtpu: 0.0.40
codegen_flags: <defaults>
</compile_context>

<pallas_src>
import functools

import jax
import jax.numpy as jnp
from jax import lax
from jax.experimental import pallas as pl
from jax.experimental.pallas import tpu as pltpu


def _round_up(n, m):
    return ((n + m - 1) // m) * m


def _sigmoid(x):
    # One EUP transcendental (tanh) instead of exp + divide.
    return 0.5 * jnp.tanh(0.5 * x) + 0.5


def _lstm_kernel(x_ref, wih_ref, whh_ref, b_ref, out_ref, h_ref, c_ref):
    # x_ref:   (t_tile, b_tile, I)   time-major input tile (mm_dtype)
    # wih_ref: (I, 4Hp)              W_ih^T, gate-padded (mm_dtype)
    # whh_ref: (Hp, 4Hp)             W_hh^T, padded (mm_dtype)
    # b_ref:   (1, 4Hp) f32          b_ih + b_hh, gate-padded
    # out_ref: (t_tile, b_tile, Hp)  hidden-state output tile (time-major)
    # h_ref, c_ref: (b_tile, Hp) f32 recurrent state, persists across time blocks
    t_tile, b_tile, I = x_ref.shape
    Hp = whh_ref.shape[0]

    # New batch block -> reset recurrent state.  Valid only because time is the inner,
    # sequential grid axis (see module comment).
    @pl.when(pl.program_id(1) == 0)
    def _init():
        h_ref[...] = jnp.zeros_like(h_ref)
        c_ref[...] = jnp.zeros_like(c_ref)

    # Fused input projection for the whole tile: one parallel MXU matmul, f32
    # accumulation, f32 bias add.  xg rows are ordered [t0*b_tile ... t0*b_tile+b_tile-1,
    # t1*..., ...] so each per-step slice below is a dense row slab.
    xg = (jnp.dot(x_ref[...].reshape(t_tile * b_tile, I), wih_ref[...],
                  preferred_element_type=jnp.float32)
          + b_ref[...])

    h = h_ref[...]
    c = c_ref[...]
    # Fully unrolled timestep loop: static slices, dense per-t output stores, full
    # scheduling visibility.  W_hh^T is read from VMEM each step (not pinned in vregs).
    for t in range(t_tile):
        g = xg[t * b_tile:(t + 1) * b_tile, :] + jnp.dot(
            h.astype(whh_ref.dtype), whh_ref[...],
            preferred_element_type=jnp.float32)
        # Lane-aligned gate slices (Hp is a multiple of 128): i, f, g, o.
        i_g = _sigmoid(g[:, 0 * Hp:1 * Hp])
        f_g = _sigmoid(g[:, 1 * Hp:2 * Hp])
        g_g = jnp.tanh(g[:, 2 * Hp:3 * Hp])
        o_g = _sigmoid(g[:, 3 * Hp:4 * Hp])
        c = f_g * c + i_g * g_g
        h = o_g * jnp.tanh(c)
        out_ref[t, :, :] = h.astype(out_ref.dtype)   # dense (b_tile, Hp) store

    h_ref[...] = h
    c_ref[...] = c


def _vmem_cap_bytes():
    """Generation-aware VMEM budget (~0.75x capacity); conservative v7x-safe fallback."""
    try:
        info = pltpu.get_tpu_info()
        cap = getattr(info, "vmem_capacity_bytes", None)
        if cap:
            return int(0.75 * cap)
    except Exception:
        pass
    return 48 * 1024 * 1024


def _pick_time_tile(T, cap=32):
    """Largest time tile <= cap dividing T (time tile only amortizes grid overhead)."""
    if T <= cap:
        return T
    for cand in range(cap, 0, -1):
        if T % cand == 0:
            return cand
    return T


def _pick_batch_tile(B, fits):
    """b_tile is the MXU M dimension of the recurrent matmul: keep it as large as VMEM
    allows.  Split across the 'parallel' grid axis only when the halves stay MXU-wide
    (>= 256, the v7x two-TensorCore case) or VMEM forces it."""
    b = B
    if B % 2 == 0 and B // 2 >= 256 and fits(B // 2):
        b = B // 2
    while not fits(b) and b % 2 == 0 and (b // 2) % 8 == 0:
        b //= 2
    return b


def lstm_block_pallas(x, w_ih, w_hh, b_ih, b_hh, *, t_tile=None, b_tile=None,
                      matmul_dtype=jnp.bfloat16):
    """Single-layer LSTM forward (batch_first).  x: (B, T, I) -> (B, T, H)."""
    B, T, I = x.shape
    H4 = w_ih.shape[0]
    H = H4 // 4
    out_dtype = x.dtype
    mm_dtype = jnp.dtype(matmul_dtype)

    # ---- Pad hidden size (per gate) to a lane-aligned width.  Zero padding keeps the
    #      padded portion of the state exactly zero, so the H-slice is bit-identical.
    Hp = _round_up(H, 128)
    wih4 = w_ih.reshape(4, H, I)
    whh4 = w_hh.reshape(4, H, H)
    b4 = (b_ih + b_hh).reshape(4, H)
    if Hp != H:
        p = Hp - H
        wih4 = jnp.pad(wih4, ((0, 0), (0, p), (0, 0)))
        whh4 = jnp.pad(whh4, ((0, 0), (0, p), (0, p)))
        b4 = jnp.pad(b4, ((0, 0), (0, p)))
    wih_t = jnp.transpose(wih4.reshape(4 * Hp, I)).astype(mm_dtype)     # (I, 4Hp)
    whh_t = jnp.transpose(whh4.reshape(4 * Hp, Hp)).astype(mm_dtype)    # (Hp, 4Hp)
    bias = b4.reshape(1, 4 * Hp).astype(jnp.float32)

    # Time-major input stream (cheap transpose: I << 4H); output produced time-major.
    xt = jnp.transpose(x, (1, 0, 2)).astype(mm_dtype)                   # (T, B, I)

    mm_isz = jnp.dtype(mm_dtype).itemsize
    out_isz = jnp.dtype(out_dtype).itemsize
    cap = _vmem_cap_bytes()

    def need(bt, tt):
        sub = lambda n: max(_round_up(n, 8), 8)
        lane = lambda n: max(n, 128)
        return (2 * tt * sub(bt) * lane(I) * mm_isz            # x tile (double-buffered)
                + 2 * tt * sub(bt) * lane(Hp) * out_isz        # out tile
                + 2 * (sub(I) + sub(Hp)) * 4 * Hp * mm_isz     # W_ih^T, W_hh^T
                + 2 * 8 * 4 * Hp * 4                           # bias
                + 2 * sub(bt) * Hp * 4                         # h, c state
                + 2 * tt * sub(bt) * 4 * Hp * 4)               # in-kernel f32 xg + temps

    if t_tile is None:
        t_tile = _pick_time_tile(T)
    if b_tile is None:
        b_tile = _pick_batch_tile(B, lambda bt: need(bt, t_tile) <= cap)
    # Under VMEM pressure shrink the time tile first; b_tile feeds the MXU.
    while need(b_tile, t_tile) > cap and t_tile % 2 == 0 and t_tile > 2:
        t_tile //= 2
    assert T % t_tile == 0 and B % b_tile == 0
    grid = (B // b_tile, T // t_tile)

    vmem_limit = int(min(max(need(b_tile, t_tile) * 3 // 2, 16 * 1024 * 1024), cap))

    out_tm = pl.pallas_call(
        _lstm_kernel,
        out_shape=jax.ShapeDtypeStruct((T, B, Hp), out_dtype),
        grid_spec=pltpu.PrefetchScalarGridSpec(
            num_scalar_prefetch=0,
            grid=grid,
            in_specs=[
                pl.BlockSpec((t_tile, b_tile, I), lambda b, t: (t, b, 0)),
                pl.BlockSpec((I, 4 * Hp), lambda b, t: (0, 0)),
                pl.BlockSpec((Hp, 4 * Hp), lambda b, t: (0, 0)),
                pl.BlockSpec((1, 4 * Hp), lambda b, t: (0, 0)),
            ],
            out_specs=pl.BlockSpec((t_tile, b_tile, Hp), lambda b, t: (t, b, 0)),
            scratch_shapes=[
                pltpu.VMEM((b_tile, Hp), jnp.float32),   # h state
                pltpu.VMEM((b_tile, Hp), jnp.float32),   # c state
            ],
        ),
        compiler_params=pltpu.CompilerParams(
            # Batch blocks are independent ("parallel"); time MUST remain the inner,
            # sequential axis because the h/c scratch carries state across it.
            dimension_semantics=("parallel", "arbitrary"),
            vmem_limit_bytes=vmem_limit,
        ),
    )(xt, wih_t, whh_t, bias)

    return jnp.transpose(out_tm[:, :, :H], (1, 0, 2))    # back to (B, T, H)


def lstm_block_ref(x, w_ih, w_hh, b_ih, b_hh):
    """Pure-JAX reference (matches PyTorch single-layer LSTM forward, batch_first)."""
    B, T, I = x.shape
    H = w_hh.shape[1]
    wih_t = jnp.transpose(w_ih)
    whh_t = jnp.transpose(w_hh)
    b = b_ih + b_hh

    def step(carry, xt):
        h, c = carry
        g = (jnp.dot(xt, wih_t, precision=lax.Precision.HIGHEST)
             + jnp.dot(h, whh_t, precision=lax.Precision.HIGHEST) + b)
        i_g = jax.nn.sigmoid(g[:, 0 * H:1 * H])
        f_g = jax.nn.sigmoid(g[:, 1 * H:2 * H])
        g_g = jnp.tanh(g[:, 2 * H:3 * H])
        o_g = jax.nn.sigmoid(g[:, 3 * H:4 * H])
        c_new = f_g * c + i_g * g_g
        h_new = o_g * jnp.tanh(c_new)
        return (h_new, c_new), h_new

    h0 = jnp.zeros((B, H), jnp.float32)
    c0 = jnp.zeros((B, H), jnp.float32)
    xs = jnp.transpose(x, (1, 0, 2))
    _, ys = lax.scan(step, (h0, c0), xs)
    return jnp.transpose(ys, (1, 0, 2)).astype(x.dtype)


if __name__ == "__main__":
    # Shapes consistent with the module's forward: x (batch, seq, in_channels).
    B, T, I, H = 2, 8, 4, 32   # batch=2, seq=8, in_channels=4, hidden(out_channels)=32

    key = jax.random.PRNGKey(0)
    kx, k1, k2, k3, k4 = jax.random.split(key, 5)

    # Deterministic parameter init mimicking PyTorch: U(-1/sqrt(H), 1/sqrt(H))
    bound = 1.0 / jnp.sqrt(jnp.float32(H))
    w_ih = jax.random.uniform(k1, (4 * H, I), jnp.float32, -bound, bound)
    w_hh = jax.random.uniform(k2, (4 * H, H), jnp.float32, -bound, bound)
    b_ih = jax.random.uniform(k3, (4 * H,), jnp.float32, -bound, bound)
    b_hh = jax.random.uniform(k4, (4 * H,), jnp.float32, -bound, bound)
    x = jax.random.normal(kx, (B, T, I), jnp.float32)

    ref = jax.block_until_ready(lstm_block_ref(x, w_ih, w_hh, b_ih, b_hh))

    # f32 MXU-operand path: tight check against the pure-JAX reference.
    out_f32 = jax.block_until_ready(
        jax.jit(functools.partial(lstm_block_pallas, matmul_dtype=jnp.float32))(
            x, w_ih, w_hh, b_ih, b_hh))
    assert out_f32.shape == (B, T, H), out_f32.shape
    assert jnp.all(jnp.isfinite(out_f32))
    assert jnp.allclose(out_f32, ref, atol=5e-3, rtol=5e-3), \
        float(jnp.max(jnp.abs(out_f32 - ref)))

    # Default path: bf16 MXU operands (all generations), f32 gate math and state.
    # NOTE: recurrent bf16 matmul error compounds with T; re-validate at realistic T.
    out_bf16 = jax.block_until_ready(
        jax.jit(lstm_block_pallas)(x, w_ih, w_hh, b_ih, b_hh))
    assert out_bf16.shape == (B, T, H)
    assert jnp.all(jnp.isfinite(out_bf16))
    assert jnp.allclose(out_bf16, ref, atol=1e-1, rtol=1e-1)

    print("KERNEL_OK")
</pallas_src>

<mosaic_0001>
module attributes {stable_mosaic.version = 11 : i64} {
  func.func @_lstm_kernel(%arg0: i32, %arg1: i32, %arg2: memref<8x2x4xf32, #tpu.memory_space<vmem>>, %arg3: memref<4x512xf32, #tpu.memory_space<vmem>>, %arg4: memref<128x512xf32, #tpu.memory_space<vmem>>, %arg5: memref<1x512xf32, #tpu.memory_space<vmem>>, %arg6: memref<8x2x128xf32, #tpu.memory_space<vmem>>, %arg7: memref<2x128xf32, #tpu.memory_space<vmem>>, %arg8: memref<2x128xf32, #tpu.memory_space<vmem>>) attributes {dimension_semantics = [#tpu.dimension_semantics<parallel>, #tpu.dimension_semantics<arbitrary>], iteration_bounds = array<i64: 1, 1>, scalar_prefetch = 0 : i64, scratch_operands = 2 : i64, tpu.core_type = #tpu.core_type<tc>, window_params = [{transform_indices = @transform_0, window_bounds = array<i64: 8, 2, 4>}, {pipeline_mode = #tpu.pipeline_mode<synchronous>, transform_indices = @transform_1, window_bounds = array<i64: 4, 512>}, {pipeline_mode = #tpu.pipeline_mode<synchronous>, transform_indices = @transform_2, window_bounds = array<i64: 128, 512>}, {pipeline_mode = #tpu.pipeline_mode<synchronous>, transform_indices = @transform_3, window_bounds = array<i64: 1, 512>}, {transform_indices = @transform_4, window_bounds = array<i64: 8, 2, 128>}]} {
    %c0_i32 = arith.constant 0 : i32
    %0 = arith.cmpi eq, %arg1, %c0_i32 : i32
    %1 = arith.extui %0 : i1 to i32
    %c0_i32_0 = arith.constant 0 : i32
    %2 = arith.cmpi ne, %1, %c0_i32_0 : i32
    scf.if %2 {
      %cst_128 = arith.constant 0.000000e+00 : f32
      %318 = vector.broadcast %cst_128 : f32 to vector<2x128xf32>
      %c0_129 = arith.constant 0 : index
      %c0_130 = arith.constant 0 : index
      %319 = vector.load %arg7[%c0_129, %c0_130] : memref<2x128xf32, #tpu.memory_space<vmem>>, vector<2x128xf32>
      tpu.vector_store %arg7[%c0_129, %c0_130], %318 {strides = array<i32>} : memref<2x128xf32, #tpu.memory_space<vmem>>, vector<2x128xf32>,
      %cst_131 = arith.constant 0.000000e+00 : f32
      %320 = vector.broadcast %cst_131 : f32 to vector<2x128xf32>
      %c0_132 = arith.constant 0 : index
      %c0_133 = arith.constant 0 : index
      %321 = vector.load %arg8[%c0_132, %c0_133] : memref<2x128xf32, #tpu.memory_space<vmem>>, vector<2x128xf32>
      tpu.vector_store %arg8[%c0_132, %c0_133], %320 {strides = array<i32>} : memref<2x128xf32, #tpu.memory_space<vmem>>, vector<2x128xf32>,
    } else {
    }
    %c0 = arith.constant 0 : index
    %c0_1 = arith.constant 0 : index
    %c0_2 = arith.constant 0 : index
    %3 = vector.load %arg2[%c0, %c0_1, %c0_2] : memref<8x2x4xf32, #tpu.memory_space<vmem>>, vector<8x2x4xf32>
    %4 = vector.shape_cast %3 : vector<8x2x4xf32> to vector<16x4xf32>
    %c0_3 = arith.constant 0 : index
    %c0_4 = arith.constant 0 : index
    %5 = vector.load %arg3[%c0_3, %c0_4] : memref<4x512xf32, #tpu.memory_space<vmem>>, vector<4x512xf32>
    %cst = arith.constant dense<0.000000e+00> : vector<16x512xf32>
    %6 = tpu.matmul %4, %5, %cst {dimension_numbers = #tpu.dot_dimension_numbers<[1], [0], [0], [1], [0, 0, 1, 1], [], []>} : vector<16x4xf32>, vector<4x512xf32>, vector<16x512xf32> -> vector<16x512xf32>
    %c0_5 = arith.constant 0 : index
    %c0_6 = arith.constant 0 : index
    %7 = vector.load %arg5[%c0_5, %c0_6] : memref<1x512xf32, #tpu.memory_space<vmem>>, vector<1x512xf32>
    %8 = vector.broadcast %7 : vector<1x512xf32> to vector<16x512xf32>
    %9 = arith.addf %6, %8 : vector<16x512xf32>
    %c0_7 = arith.constant 0 : index
    %c0_8 = arith.constant 0 : index
    %10 = vector.load %arg7[%c0_7, %c0_8] : memref<2x128xf32, #tpu.memory_space<vmem>>, vector<2x128xf32>
    %c0_9 = arith.constant 0 : index
    %c0_10 = arith.constant 0 : index
    %11 = vector.load %arg8[%c0_9, %c0_10] : memref<2x128xf32, #tpu.memory_space<vmem>>, vector<2x128xf32>
    %12 = vector.extract_strided_slice %9 {offsets = [0, 0], sizes = [2, 512], strides = [1, 1]} : vector<16x512xf32> to vector<2x512xf32>
    %c0_11 = arith.constant 0 : index
    %c0_12 = arith.constant 0 : index
    %13 = vector.load %arg4[%c0_11, %c0_12] : memref<128x512xf32, #tpu.memory_space<vmem>>, vector<128x512xf32>
    %cst_13 = arith.constant dense<0.000000e+00> : vector<2x512xf32>
    %14 = tpu.matmul %10, %13, %cst_13 {dimension_numbers = #tpu.dot_dimension_numbers<[1], [0], [0], [1], [0, 0, 1, 1], [], []>} : vector<2x128xf32>, vector<128x512xf32>, vector<2x512xf32> -> vector<2x512xf32>
    %15 = arith.addf %12, %14 : vector<2x512xf32>
    %16 = vector.extract_strided_slice %15 {offsets = [0, 0], sizes = [2, 128], strides = [1, 1]} : vector<2x512xf32> to vector<2x128xf32>
    %cst_14 = arith.constant 5.000000e-01 : f32
    %17 = vector.broadcast %cst_14 : f32 to vector<2x128xf32>
    %18 = arith.mulf %17, %16 : vector<2x128xf32>
    %19 = math.tanh %18 : vector<2x128xf32>
    %cst_15 = arith.constant 5.000000e-01 : f32
    %20 = vector.broadcast %cst_15 : f32 to vector<2x128xf32>
    %21 = arith.mulf %20, %19 : vector<2x128xf32>
    %cst_16 = arith.constant 5.000000e-01 : f32
    %22 = vector.broadcast %cst_16 : f32 to vector<2x128xf32>
    %23 = arith.addf %21, %22 : vector<2x128xf32>
    %24 = vector.extract_strided_slice %15 {offsets = [0, 128], sizes = [2, 128], strides = [1, 1]} : vector<2x512xf32> to vector<2x128xf32>
    %cst_17 = arith.constant 5.000000e-01 : f32
    %25 = vector.broadcast %cst_17 : f32 to vector<2x128xf32>
    %26 = arith.mulf %25, %24 : vector<2x128xf32>
    %27 = math.tanh %26 : vector<2x128xf32>
    %cst_18 = arith.constant 5.000000e-01 : f32
    %28 = vector.broadcast %cst_18 : f32 to vector<2x128xf32>
    %29 = arith.mulf %28, %27 : vector<2x128xf32>
    %cst_19 = arith.constant 5.000000e-01 : f32
    %30 = vector.broadcast %cst_19 : f32 to vector<2x128xf32>
    %31 = arith.addf %29, %30 : vector<2x128xf32>
    %32 = vector.extract_strided_slice %15 {offsets = [0, 256], sizes = [2, 128], strides = [1, 1]} : vector<2x512xf32> to vector<2x128xf32>
    %33 = math.tanh %32 : vector<2x128xf32>
    %34 = vector.extract_strided_slice %15 {offsets = [0, 384], sizes = [2, 128], strides = [1, 1]} : vector<2x512xf32> to vector<2x128xf32>
    %cst_20 = arith.constant 5.000000e-01 : f32
    %35 = vector.broadcast %cst_20 : f32 to vector<2x128xf32>
    %36 = arith.mulf %35, %34 : vector<2x128xf32>
    %37 = math.tanh %36 : vector<2x128xf32>
    %cst_21 = arith.constant 5.000000e-01 : f32
    %38 = vector.broadcast %cst_21 : f32 to vector<2x128xf32>
    %39 = arith.mulf %38, %37 : vector<2x128xf32>
    %cst_22 = arith.constant 5.000000e-01 : f32
    %40 = vector.broadcast %cst_22 : f32 to vector<2x128xf32>
    %41 = arith.addf %39, %40 : vector<2x128xf32>
    %42 = arith.mulf %31, %11 : vector<2x128xf32>
    %43 = arith.mulf %23, %33 : vector<2x128xf32>
    %44 = arith.addf %42, %43 : vector<2x128xf32>
    %45 = math.tanh %44 : vector<2x128xf32>
    %46 = arith.mulf %41, %45 : vector<2x128xf32>
    %c0_23 = arith.constant 0 : index
    %c0_24 = arith.constant 0 : index
    %c0_25 = arith.constant 0 : index
    %47 = vector.load %arg6[%c0_23, %c0_24, %c0_25] : memref<8x2x128xf32, #tpu.memory_space<vmem>>, vector<1x2x128xf32>
    %48 = vector.shape_cast %47 : vector<1x2x128xf32> to vector<2x128xf32>
    %49 = vector.shape_cast %46 : vector<2x128xf32> to vector<1x2x128xf32>
    tpu.vector_store %arg6[%c0_23, %c0_24, %c0_25], %49 {strides = array<i32>} : memref<8x2x128xf32, #tpu.memory_space<vmem>>, vector<1x2x128xf32>,
    %50 = vector.extract_strided_slice %9 {offsets = [2, 0], sizes = [2, 512], strides = [1, 1]} : vector<16x512xf32> to vector<2x512xf32>
    %c0_26 = arith.constant 0 : index
    %c0_27 = arith.constant 0 : index
    %51 = vector.load %arg4[%c0_26, %c0_27] : memref<128x512xf32, #tpu.memory_space<vmem>>, vector<128x512xf32>
    %cst_28 = arith.constant dense<0.000000e+00> : vector<2x512xf32>
    %52 = tpu.matmul %46, %51, %cst_28 {dimension_numbers = #tpu.dot_dimension_numbers<[1], [0], [0], [1], [0, 0, 1, 1], [], []>} : vector<2x128xf32>, vector<128x512xf32>, vector<2x512xf32> -> vector<2x512xf32>
    %53 = arith.addf %50, %52 : vector<2x512xf32>
    %54 = vector.extract_strided_slice %53 {offsets = [0, 0], sizes = [2, 128], strides = [1, 1]} : vector<2x512xf32> to vector<2x128xf32>
    %cst_29 = arith.constant 5.000000e-01 : f32
    %55 = vector.broadcast %cst_29 : f32 to vector<2x128xf32>
    %56 = arith.mulf %55, %54 : vector<2x128xf32>
    %57 = math.tanh %56 : vector<2x128xf32>
    %cst_30 = arith.constant 5.000000e-01 : f32
    %58 = vector.broadcast %cst_30 : f32 to vector<2x128xf32>
    %59 = arith.mulf %58, %57 : vector<2x128xf32>
    %cst_31 = arith.constant 5.000000e-01 : f32
    %60 = vector.broadcast %cst_31 : f32 to vector<2x128xf32>
    %61 = arith.addf %59, %60 : vector<2x128xf32>
    %62 = vector.extract_strided_slice %53 {offsets = [0, 128], sizes = [2, 128], strides = [1, 1]} : vector<2x512xf32> to vector<2x128xf32>
    %cst_32 = arith.constant 5.000000e-01 : f32
    %63 = vector.broadcast %cst_32 : f32 to vector<2x128xf32>
    %64 = arith.mulf %63, %62 : vector<2x128xf32>
    %65 = math.tanh %64 : vector<2x128xf32>
    %cst_33 = arith.constant 5.000000e-01 : f32
    %66 = vector.broadcast %cst_33 : f32 to vector<2x128xf32>
    %67 = arith.mulf %66, %65 : vector<2x128xf32>
    %cst_34 = arith.constant 5.000000e-01 : f32
    %68 = vector.broadcast %cst_34 : f32 to vector<2x128xf32>
    %69 = arith.addf %67, %68 : vector<2x128xf32>
    %70 = vector.extract_strided_slice %53 {offsets = [0, 256], sizes = [2, 128], strides = [1, 1]} : vector<2x512xf32> to vector<2x128xf32>
    %71 = math.tanh %70 : vector<2x128xf32>
    %72 = vector.extract_strided_slice %53 {offsets = [0, 384], sizes = [2, 128], strides = [1, 1]} : vector<2x512xf32> to vector<2x128xf32>
    %cst_35 = arith.constant 5.000000e-01 : f32
    %73 = vector.broadcast %cst_35 : f32 to vector<2x128xf32>
    %74 = arith.mulf %73, %72 : vector<2x128xf32>
    %75 = math.tanh %74 : vector<2x128xf32>
    %cst_36 = arith.constant 5.000000e-01 : f32
    %76 = vector.broadcast %cst_36 : f32 to vector<2x128xf32>
    %77 = arith.mulf %76, %75 : vector<2x128xf32>
    %cst_37 = arith.constant 5.000000e-01 : f32
    %78 = vector.broadcast %cst_37 : f32 to vector<2x128xf32>
    %79 = arith.addf %77, %78 : vector<2x128xf32>
    %80 = arith.mulf %69, %44 : vector<2x128xf32>
    %81 = arith.mulf %61, %71 : vector<2x128xf32>
    %82 = arith.addf %80, %81 : vector<2x128xf32>
    %83 = math.tanh %82 : vector<2x128xf32>
    %84 = arith.mulf %79, %83 : vector<2x128xf32>
    %c1 = arith.constant 1 : index
    %c0_38 = arith.constant 0 : index
    %c0_39 = arith.constant 0 : index
    %85 = vector.load %arg6[%c1, %c0_38, %c0_39] : memref<8x2x128xf32, #tpu.memory_space<vmem>>, vector<1x2x128xf32>
    %86 = vector.shape_cast %85 : vector<1x2x128xf32> to vector<2x128xf32>
    %87 = vector.shape_cast %84 : vector<2x128xf32> to vector<1x2x128xf32>
    tpu.vector_store %arg6[%c1, %c0_38, %c0_39], %87 {strides = array<i32>} : memref<8x2x128xf32, #tpu.memory_space<vmem>>, vector<1x2x128xf32>,
    %88 = vector.extract_strided_slice %9 {offsets = [4, 0], sizes = [2, 512], strides = [1, 1]} : vector<16x512xf32> to vector<2x512xf32>
    %c0_40 = arith.constant 0 : index
    %c0_41 = arith.constant 0 : index
    %89 = vector.load %arg4[%c0_40, %c0_41] : memref<128x512xf32, #tpu.memory_space<vmem>>, vector<128x512xf32>
    %cst_42 = arith.constant dense<0.000000e+00> : vector<2x512xf32>
    %90 = tpu.matmul %84, %89, %cst_42 {dimension_numbers = #tpu.dot_dimension_numbers<[1], [0], [0], [1], [0, 0, 1, 1], [], []>} : vector<2x128xf32>, vector<128x512xf32>, vector<2x512xf32> -> vector<2x512xf32>
    %91 = arith.addf %88, %90 : vector<2x512xf32>
    %92 = vector.extract_strided_slice %91 {offsets = [0, 0], sizes = [2, 128], strides = [1, 1]} : vector<2x512xf32> to vector<2x128xf32>
    %cst_43 = arith.constant 5.000000e-01 : f32
    %93 = vector.broadcast %cst_43 : f32 to vector<2x128xf32>
    %94 = arith.mulf %93, %92 : vector<2x128xf32>
    %95 = math.tanh %94 : vector<2x128xf32>
    %cst_44 = arith.constant 5.000000e-01 : f32
    %96 = vector.broadcast %cst_44 : f32 to vector<2x128xf32>
    %97 = arith.mulf %96, %95 : vector<2x128xf32>
    %cst_45 = arith.constant 5.000000e-01 : f32
    %98 = vector.broadcast %cst_45 : f32 to vector<2x128xf32>
    %99 = arith.addf %97, %98 : vector<2x128xf32>
    %100 = vector.extract_strided_slice %91 {offsets = [0, 128], sizes = [2, 128], strides = [1, 1]} : vector<2x512xf32> to vector<2x128xf32>
    %cst_46 = arith.constant 5.000000e-01 : f32
    %101 = vector.broadcast %cst_46 : f32 to vector<2x128xf32>
    %102 = arith.mulf %101, %100 : vector<2x128xf32>
    %103 = math.tanh %102 : vector<2x128xf32>
    %cst_47 = arith.constant 5.000000e-01 : f32
    %104 = vector.broadcast %cst_47 : f32 to vector<2x128xf32>
    %105 = arith.mulf %104, %103 : vector<2x128xf32>
    %cst_48 = arith.constant 5.000000e-01 : f32
    %106 = vector.broadcast %cst_48 : f32 to vector<2x128xf32>
    %107 = arith.addf %105, %106 : vector<2x128xf32>
    %108 = vector.extract_strided_slice %91 {offsets = [0, 256], sizes = [2, 128], strides = [1, 1]} : vector<2x512xf32> to vector<2x128xf32>
    %109 = math.tanh %108 : vector<2x128xf32>
    %110 = vector.extract_strided_slice %91 {offsets = [0, 384], sizes = [2, 128], strides = [1, 1]} : vector<2x512xf32> to vector<2x128xf32>
    %cst_49 = arith.constant 5.000000e-01 : f32
    %111 = vector.broadcast %cst_49 : f32 to vector<2x128xf32>
    %112 = arith.mulf %111, %110 : vector<2x128xf32>
    %113 = math.tanh %112 : vector<2x128xf32>
    %cst_50 = arith.constant 5.000000e-01 : f32
    %114 = vector.broadcast %cst_50 : f32 to vector<2x128xf32>
    %115 = arith.mulf %114, %113 : vector<2x128xf32>
    %cst_51 = arith.constant 5.000000e-01 : f32
    %116 = vector.broadcast %cst_51 : f32 to vector<2x128xf32>
    %117 = arith.addf %115, %116 : vector<2x128xf32>
    %118 = arith.mulf %107, %82 : vector<2x128xf32>
    %119 = arith.mulf %99, %109 : vector<2x128xf32>
    %120 = arith.addf %118, %119 : vector<2x128xf32>
    %121 = math.tanh %120 : vector<2x128xf32>
    %122 = arith.mulf %117, %121 : vector<2x128xf32>
    %c2 = arith.constant 2 : index
    %c0_52 = arith.constant 0 : index
    %c0_53 = arith.constant 0 : index
    %123 = vector.load %arg6[%c2, %c0_52, %c0_53] : memref<8x2x128xf32, #tpu.memory_space<vmem>>, vector<1x2x128xf32>
    %124 = vector.shape_cast %123 : vector<1x2x128xf32> to vector<2x128xf32>
    %125 = vector.shape_cast %122 : vector<2x128xf32> to vector<1x2x128xf32>
    tpu.vector_store %arg6[%c2, %c0_52, %c0_53], %125 {strides = array<i32>} : memref<8x2x128xf32, #tpu.memory_space<vmem>>, vector<1x2x128xf32>,
    %126 = vector.extract_strided_slice %9 {offsets = [6, 0], sizes = [2, 512], strides = [1, 1]} : vector<16x512xf32> to vector<2x512xf32>
    %c0_54 = arith.constant 0 : index
    %c0_55 = arith.constant 0 : index
    %127 = vector.load %arg4[%c0_54, %c0_55] : memref<128x512xf32, #tpu.memory_space<vmem>>, vector<128x512xf32>
    %cst_56 = arith.constant dense<0.000000e+00> : vector<2x512xf32>
    %128 = tpu.matmul %122, %127, %cst_56 {dimension_numbers = #tpu.dot_dimension_numbers<[1], [0], [0], [1], [0, 0, 1, 1], [], []>} : vector<2x128xf32>, vector<128x512xf32>, vector<2x512xf32> -> vector<2x512xf32>
    %129 = arith.addf %126, %128 : vector<2x512xf32>
    %130 = vector.extract_strided_slice %129 {offsets = [0, 0], sizes = [2, 128], strides = [1, 1]} : vector<2x512xf32> to vector<2x128xf32>
    %cst_57 = arith.constant 5.000000e-01 : f32
    %131 = vector.broadcast %cst_57 : f32 to vector<2x128xf32>
    %132 = arith.mulf %131, %130 : vector<2x128xf32>
    %133 = math.tanh %132 : vector<2x128xf32>
    %cst_58 = arith.constant 5.000000e-01 : f32
    %134 = vector.broadcast %cst_58 : f32 to vector<2x128xf32>
    %135 = arith.mulf %134, %133 : vector<2x128xf32>
    %cst_59 = arith.constant 5.000000e-01 : f32
    %136 = vector.broadcast %cst_59 : f32 to vector<2x128xf32>
    %137 = arith.addf %135, %136 : vector<2x128xf32>
    %138 = vector.extract_strided_slice %129 {offsets = [0, 128], sizes = [2, 128], strides = [1, 1]} : vector<2x512xf32> to vector<2x128xf32>
    %cst_60 = arith.constant 5.000000e-01 : f32
    %139 = vector.broadcast %cst_60 : f32 to vector<2x128xf32>
    %140 = arith.mulf %139, %138 : vector<2x128xf32>
    %141 = math.tanh %140 : vector<2x128xf32>
    %cst_61 = arith.constant 5.000000e-01 : f32
    %142 = vector.broadcast %cst_61 : f32 to vector<2x128xf32>
    %143 = arith.mulf %142, %141 : vector<2x128xf32>
    %cst_62 = arith.constant 5.000000e-01 : f32
    %144 = vector.broadcast %cst_62 : f32 to vector<2x128xf32>
    %145 = arith.addf %143, %144 : vector<2x128xf32>
    %146 = vector.extract_strided_slice %129 {offsets = [0, 256], sizes = [2, 128], strides = [1, 1]} : vector<2x512xf32> to vector<2x128xf32>
    %147 = math.tanh %146 : vector<2x128xf32>
    %148 = vector.extract_strided_slice %129 {offsets = [0, 384], sizes = [2, 128], strides = [1, 1]} : vector<2x512xf32> to vector<2x128xf32>
    %cst_63 = arith.constant 5.000000e-01 : f32
    %149 = vector.broadcast %cst_63 : f32 to vector<2x128xf32>
    %150 = arith.mulf %149, %148 : vector<2x128xf32>
    %151 = math.tanh %150 : vector<2x128xf32>
    %cst_64 = arith.constant 5.000000e-01 : f32
    %152 = vector.broadcast %cst_64 : f32 to vector<2x128xf32>
    %153 = arith.mulf %152, %151 : vector<2x128xf32>
    %cst_65 = arith.constant 5.000000e-01 : f32
    %154 = vector.broadcast %cst_65 : f32 to vector<2x128xf32>
    %155 = arith.addf %153, %154 : vector<2x128xf32>
    %156 = arith.mulf %145, %120 : vector<2x128xf32>
    %157 = arith.mulf %137, %147 : vector<2x128xf32>
    %158 = arith.addf %156, %157 : vector<2x128xf32>
    %159 = math.tanh %158 : vector<2x128xf32>
    %160 = arith.mulf %155, %159 : vector<2x128xf32>
    %c3 = arith.constant 3 : index
    %c0_66 = arith.constant 0 : index
    %c0_67 = arith.constant 0 : index
    %161 = vector.load %arg6[%c3, %c0_66, %c0_67] : memref<8x2x128xf32, #tpu.memory_space<vmem>>, vector<1x2x128xf32>
    %162 = vector.shape_cast %161 : vector<1x2x128xf32> to vector<2x128xf32>
    %163 = vector.shape_cast %160 : vector<2x128xf32> to vector<1x2x128xf32>
    tpu.vector_store %arg6[%c3, %c0_66, %c0_67], %163 {strides = array<i32>} : memref<8x2x128xf32, #tpu.memory_space<vmem>>, vector<1x2x128xf32>,
    %164 = vector.extract_strided_slice %9 {offsets = [8, 0], sizes = [2, 512], strides = [1, 1]} : vector<16x512xf32> to vector<2x512xf32>
    %c0_68 = arith.constant 0 : index
    %c0_69 = arith.constant 0 : index
    %165 = vector.load %arg4[%c0_68, %c0_69] : memref<128x512xf32, #tpu.memory_space<vmem>>, vector<128x512xf32>
    %cst_70 = arith.constant dense<0.000000e+00> : vector<2x512xf32>
    %166 = tpu.matmul %160, %165, %cst_70 {dimension_numbers = #tpu.dot_dimension_numbers<[1], [0], [0], [1], [0, 0, 1, 1], [], []>} : vector<2x128xf32>, vector<128x512xf32>, vector<2x512xf32> -> vector<2x512xf32>
    %167 = arith.addf %164, %166 : vector<2x512xf32>
    %168 = vector.extract_strided_slice %167 {offsets = [0, 0], sizes = [2, 128], strides = [1, 1]} : vector<2x512xf32> to vector<2x128xf32>
    %cst_71 = arith.constant 5.000000e-01 : f32
    %169 = vector.broadcast %cst_71 : f32 to vector<2x128xf32>
    %170 = arith.mulf %169, %168 : vector<2x128xf32>
    %171 = math.tanh %170 : vector<2x128xf32>
    %cst_72 = arith.constant 5.000000e-01 : f32
    %172 = vector.broadcast %cst_72 : f32 to vector<2x128xf32>
    %173 = arith.mulf %172, %171 : vector<2x128xf32>
    %cst_73 = arith.constant 5.000000e-01 : f32
    %174 = vector.broadcast %cst_73 : f32 to vector<2x128xf32>
    %175 = arith.addf %173, %174 : vector<2x128xf32>
    %176 = vector.extract_strided_slice %167 {offsets = [0, 128], sizes = [2, 128], strides = [1, 1]} : vector<2x512xf32> to vector<2x128xf32>
    %cst_74 = arith.constant 5.000000e-01 : f32
    %177 = vector.broadcast %cst_74 : f32 to vector<2x128xf32>
    %178 = arith.mulf %177, %176 : vector<2x128xf32>
    %179 = math.tanh %178 : vector<2x128xf32>
    %cst_75 = arith.constant 5.000000e-01 : f32
    %180 = vector.broadcast %cst_75 : f32 to vector<2x128xf32>
    %181 = arith.mulf %180, %179 : vector<2x128xf32>
    %cst_76 = arith.constant 5.000000e-01 : f32
    %182 = vector.broadcast %cst_76 : f32 to vector<2x128xf32>
    %183 = arith.addf %181, %182 : vector<2x128xf32>
    %184 = vector.extract_strided_slice %167 {offsets = [0, 256], sizes = [2, 128], strides = [1, 1]} : vector<2x512xf32> to vector<2x128xf32>
    %185 = math.tanh %184 : vector<2x128xf32>
    %186 = vector.extract_strided_slice %167 {offsets = [0, 384], sizes = [2, 128], strides = [1, 1]} : vector<2x512xf32> to vector<2x128xf32>
    %cst_77 = arith.constant 5.000000e-01 : f32
    %187 = vector.broadcast %cst_77 : f32 to vector<2x128xf32>
    %188 = arith.mulf %187, %186 : vector<2x128xf32>
    %189 = math.tanh %188 : vector<2x128xf32>
    %cst_78 = arith.constant 5.000000e-01 : f32
    %190 = vector.broadcast %cst_78 : f32 to vector<2x128xf32>
    %191 = arith.mulf %190, %189 : vector<2x128xf32>
    %cst_79 = arith.constant 5.000000e-01 : f32
    %192 = vector.broadcast %cst_79 : f32 to vector<2x128xf32>
    %193 = arith.addf %191, %192 : vector<2x128xf32>
    %194 = arith.mulf %183, %158 : vector<2x128xf32>
    %195 = arith.mulf %175, %185 : vector<2x128xf32>
    %196 = arith.addf %194, %195 : vector<2x128xf32>
    %197 = math.tanh %196 : vector<2x128xf32>
    %198 = arith.mulf %193, %197 : vector<2x128xf32>
    %c4 = arith.constant 4 : index
    %c0_80 = arith.constant 0 : index
    %c0_81 = arith.constant 0 : index
    %199 = vector.load %arg6[%c4, %c0_80, %c0_81] : memref<8x2x128xf32, #tpu.memory_space<vmem>>, vector<1x2x128xf32>
    %200 = vector.shape_cast %199 : vector<1x2x128xf32> to vector<2x128xf32>
    %201 = vector.shape_cast %198 : vector<2x128xf32> to vector<1x2x128xf32>
    tpu.vector_store %arg6[%c4, %c0_80, %c0_81], %201 {strides = array<i32>} : memref<8x2x128xf32, #tpu.memory_space<vmem>>, vector<1x2x128xf32>,
    %202 = vector.extract_strided_slice %9 {offsets = [10, 0], sizes = [2, 512], strides = [1, 1]} : vector<16x512xf32> to vector<2x512xf32>
    %c0_82 = arith.constant 0 : index
    %c0_83 = arith.constant 0 : index
    %203 = vector.load %arg4[%c0_82, %c0_83] : memref<128x512xf32, #tpu.memory_space<vmem>>, vector<128x512xf32>
    %cst_84 = arith.constant dense<0.000000e+00> : vector<2x512xf32>
    %204 = tpu.matmul %198, %203, %cst_84 {dimension_numbers = #tpu.dot_dimension_numbers<[1], [0], [0], [1], [0, 0, 1, 1], [], []>} : vector<2x128xf32>, vector<128x512xf32>, vector<2x512xf32> -> vector<2x512xf32>
    %205 = arith.addf %202, %204 : vector<2x512xf32>
    %206 = vector.extract_strided_slice %205 {offsets = [0, 0], sizes = [2, 128], strides = [1, 1]} : vector<2x512xf32> to vector<2x128xf32>
    %cst_85 = arith.constant 5.000000e-01 : f32
    %207 = vector.broadcast %cst_85 : f32 to vector<2x128xf32>
    %208 = arith.mulf %207, %206 : vector<2x128xf32>
    %209 = math.tanh %208 : vector<2x128xf32>
    %cst_86 = arith.constant 5.000000e-01 : f32
    %210 = vector.broadcast %cst_86 : f32 to vector<2x128xf32>
    %211 = arith.mulf %210, %209 : vector<2x128xf32>
    %cst_87 = arith.constant 5.000000e-01 : f32
    %212 = vector.broadcast %cst_87 : f32 to vector<2x128xf32>
    %213 = arith.addf %211, %212 : vector<2x128xf32>
    %214 = vector.extract_strided_slice %205 {offsets = [0, 128], sizes = [2, 128], strides = [1, 1]} : vector<2x512xf32> to vector<2x128xf32>
    %cst_88 = arith.constant 5.000000e-01 : f32
    %215 = vector.broadcast %cst_88 : f32 to vector<2x128xf32>
    %216 = arith.mulf %215, %214 : vector<2x128xf32>
    %217 = math.tanh %216 : vector<2x128xf32>
    %cst_89 = arith.constant 5.000000e-01 : f32
    %218 = vector.broadcast %cst_89 : f32 to vector<2x128xf32>
    %219 = arith.mulf %218, %217 : vector<2x128xf32>
    %cst_90 = arith.constant 5.000000e-01 : f32
    %220 = vector.broadcast %cst_90 : f32 to vector<2x128xf32>
    %221 = arith.addf %219, %220 : vector<2x128xf32>
    %222 = vector.extract_strided_slice %205 {offsets = [0, 256], sizes = [2, 128], strides = [1, 1]} : vector<2x512xf32> to vector<2x128xf32>
    %223 = math.tanh %222 : vector<2x128xf32>
    %224 = vector.extract_strided_slice %205 {offsets = [0, 384], sizes = [2, 128], strides = [1, 1]} : vector<2x512xf32> to vector<2x128xf32>
    %cst_91 = arith.constant 5.000000e-01 : f32
    %225 = vector.broadcast %cst_91 : f32 to vector<2x128xf32>
    %226 = arith.mulf %225, %224 : vector<2x128xf32>
    %227 = math.tanh %226 : vector<2x128xf32>
    %cst_92 = arith.constant 5.000000e-01 : f32
    %228 = vector.broadcast %cst_92 : f32 to vector<2x128xf32>
    %229 = arith.mulf %228, %227 : vector<2x128xf32>
    %cst_93 = arith.constant 5.000000e-01 : f32
    %230 = vector.broadcast %cst_93 : f32 to vector<2x128xf32>
    %231 = arith.addf %229, %230 : vector<2x128xf32>
    %232 = arith.mulf %221, %196 : vector<2x128xf32>
    %233 = arith.mulf %213, %223 : vector<2x128xf32>
    %234 = arith.addf %232, %233 : vector<2x128xf32>
    %235 = math.tanh %234 : vector<2x128xf32>
    %236 = arith.mulf %231, %235 : vector<2x128xf32>
    %c5 = arith.constant 5 : index
    %c0_94 = arith.constant 0 : index
    %c0_95 = arith.constant 0 : index
    %237 = vector.load %arg6[%c5, %c0_94, %c0_95] : memref<8x2x128xf32, #tpu.memory_space<vmem>>, vector<1x2x128xf32>
    %238 = vector.shape_cast %237 : vector<1x2x128xf32> to vector<2x128xf32>
    %239 = vector.shape_cast %236 : vector<2x128xf32> to vector<1x2x128xf32>
    tpu.vector_store %arg6[%c5, %c0_94, %c0_95], %239 {strides = array<i32>} : memref<8x2x128xf32, #tpu.memory_space<vmem>>, vector<1x2x128xf32>,
    %240 = vector.extract_strided_slice %9 {offsets = [12, 0], sizes = [2, 512], strides = [1, 1]} : vector<16x512xf32> to vector<2x512xf32>
    %c0_96 = arith.constant 0 : index
    %c0_97 = arith.constant 0 : index
    %241 = vector.load %arg4[%c0_96, %c0_97] : memref<128x512xf32, #tpu.memory_space<vmem>>, vector<128x512xf32>
    %cst_98 = arith.constant dense<0.000000e+00> : vector<2x512xf32>
    %242 = tpu.matmul %236, %241, %cst_98 {dimension_numbers = #tpu.dot_dimension_numbers<[1], [0], [0], [1], [0, 0, 1, 1], [], []>} : vector<2x128xf32>, vector<128x512xf32>, vector<2x512xf32> -> vector<2x512xf32>
    %243 = arith.addf %240, %242 : vector<2x512xf32>
    %244 = vector.extract_strided_slice %243 {offsets = [0, 0], sizes = [2, 128], strides = [1, 1]} : vector<2x512xf32> to vector<2x128xf32>
    %cst_99 = arith.constant 5.000000e-01 : f32
    %245 = vector.broadcast %cst_99 : f32 to vector<2x128xf32>
    %246 = arith.mulf %245, %244 : vector<2x128xf32>
    %247 = math.tanh %246 : vector<2x128xf32>
    %cst_100 = arith.constant 5.000000e-01 : f32
    %248 = vector.broadcast %cst_100 : f32 to vector<2x128xf32>
    %249 = arith.mulf %248, %247 : vector<2x128xf32>
    %cst_101 = arith.constant 5.000000e-01 : f32
    %250 = vector.broadcast %cst_101 : f32 to vector<2x128xf32>
    %251 = arith.addf %249, %250 : vector<2x128xf32>
    %252 = vector.extract_strided_slice %243 {offsets = [0, 128], sizes = [2, 128], strides = [1, 1]} : vector<2x512xf32> to vector<2x128xf32>
    %cst_102 = arith.constant 5.000000e-01 : f32
    %253 = vector.broadcast %cst_102 : f32 to vector<2x128xf32>
    %254 = arith.mulf %253, %252 : vector<2x128xf32>
    %255 = math.tanh %254 : vector<2x128xf32>
    %cst_103 = arith.constant 5.000000e-01 : f32
    %256 = vector.broadcast %cst_103 : f32 to vector<2x128xf32>
    %257 = arith.mulf %256, %255 : vector<2x128xf32>
    %cst_104 = arith.constant 5.000000e-01 : f32
    %258 = vector.broadcast %cst_104 : f32 to vector<2x128xf32>
    %259 = arith.addf %257, %258 : vector<2x128xf32>
    %260 = vector.extract_strided_slice %243 {offsets = [0, 256], sizes = [2, 128], strides = [1, 1]} : vector<2x512xf32> to vector<2x128xf32>
    %261 = math.tanh %260 : vector<2x128xf32>
    %262 = vector.extract_strided_slice %243 {offsets = [0, 384], sizes = [2, 128], strides = [1, 1]} : vector<2x512xf32> to vector<2x128xf32>
    %cst_105 = arith.constant 5.000000e-01 : f32
    %263 = vector.broadcast %cst_105 : f32 to vector<2x128xf32>
    %264 = arith.mulf %263, %262 : vector<2x128xf32>
    %265 = math.tanh %264 : vector<2x128xf32>
    %cst_106 = arith.constant 5.000000e-01 : f32
    %266 = vector.broadcast %cst_106 : f32 to vector<2x128xf32>
    %267 = arith.mulf %266, %265 : vector<2x128xf32>
    %cst_107 = arith.constant 5.000000e-01 : f32
    %268 = vector.broadcast %cst_107 : f32 to vector<2x128xf32>
    %269 = arith.addf %267, %268 : vector<2x128xf32>
    %270 = arith.mulf %259, %234 : vector<2x128xf32>
    %271 = arith.mulf %251, %261 : vector<2x128xf32>
    %272 = arith.addf %270, %271 : vector<2x128xf32>
    %273 = math.tanh %272 : vector<2x128xf32>
    %274 = arith.mulf %269, %273 : vector<2x128xf32>
    %c6 = arith.constant 6 : index
    %c0_108 = arith.constant 0 : index
    %c0_109 = arith.constant 0 : index
    %275 = vector.load %arg6[%c6, %c0_108, %c0_109] : memref<8x2x128xf32, #tpu.memory_space<vmem>>, vector<1x2x128xf32>
    %276 = vector.shape_cast %275 : vector<1x2x128xf32> to vector<2x128xf32>
    %277 = vector.shape_cast %274 : vector<2x128xf32> to vector<1x2x128xf32>
    tpu.vector_store %arg6[%c6, %c0_108, %c0_109], %277 {strides = array<i32>} : memref<8x2x128xf32, #tpu.memory_space<vmem>>, vector<1x2x128xf32>,
    %278 = vector.extract_strided_slice %9 {offsets = [14, 0], sizes = [2, 512], strides = [1, 1]} : vector<16x512xf32> to vector<2x512xf32>
    %c0_110 = arith.constant 0 : index
    %c0_111 = arith.constant 0 : index
    %279 = vector.load %arg4[%c0_110, %c0_111] : memref<128x512xf32, #tpu.memory_space<vmem>>, vector<128x512xf32>
    %cst_112 = arith.constant dense<0.000000e+00> : vector<2x512xf32>
    %280 = tpu.matmul %274, %279, %cst_112 {dimension_numbers = #tpu.dot_dimension_numbers<[1], [0], [0], [1], [0, 0, 1, 1], [], []>} : vector<2x128xf32>, vector<128x512xf32>, vector<2x512xf32> -> vector<2x512xf32>
    %281 = arith.addf %278, %280 : vector<2x512xf32>
    %282 = vector.extract_strided_slice %281 {offsets = [0, 0], sizes = [2, 128], strides = [1, 1]} : vector<2x512xf32> to vector<2x128xf32>
    %cst_113 = arith.constant 5.000000e-01 : f32
    %283 = vector.broadcast %cst_113 : f32 to vector<2x128xf32>
    %284 = arith.mulf %283, %282 : vector<2x128xf32>
    %285 = math.tanh %284 : vector<2x128xf32>
    %cst_114 = arith.constant 5.000000e-01 : f32
    %286 = vector.broadcast %cst_114 : f32 to vector<2x128xf32>
    %287 = arith.mulf %286, %285 : vector<2x128xf32>
    %cst_115 = arith.constant 5.000000e-01 : f32
    %288 = vector.broadcast %cst_115 : f32 to vector<2x128xf32>
    %289 = arith.addf %287, %288 : vector<2x128xf32>
    %290 = vector.extract_strided_slice %281 {offsets = [0, 128], sizes = [2, 128], strides = [1, 1]} : vector<2x512xf32> to vector<2x128xf32>
    %cst_116 = arith.constant 5.000000e-01 : f32
    %291 = vector.broadcast %cst_116 : f32 to vector<2x128xf32>
    %292 = arith.mulf %291, %290 : vector<2x128xf32>
    %293 = math.tanh %292 : vector<2x128xf32>
    %cst_117 = arith.constant 5.000000e-01 : f32
    %294 = vector.broadcast %cst_117 : f32 to vector<2x128xf32>
    %295 = arith.mulf %294, %293 : vector<2x128xf32>
    %cst_118 = arith.constant 5.000000e-01 : f32
    %296 = vector.broadcast %cst_118 : f32 to vector<2x128xf32>
    %297 = arith.addf %295, %296 : vector<2x128xf32>
    %298 = vector.extract_strided_slice %281 {offsets = [0, 256], sizes = [2, 128], strides = [1, 1]} : vector<2x512xf32> to vector<2x128xf32>
    %299 = math.tanh %298 : vector<2x128xf32>
    %300 = vector.extract_strided_slice %281 {offsets = [0, 384], sizes = [2, 128], strides = [1, 1]} : vector<2x512xf32> to vector<2x128xf32>
    %cst_119 = arith.constant 5.000000e-01 : f32
    %301 = vector.broadcast %cst_119 : f32 to vector<2x128xf32>
    %302 = arith.mulf %301, %300 : vector<2x128xf32>
    %303 = math.tanh %302 : vector<2x128xf32>
    %cst_120 = arith.constant 5.000000e-01 : f32
    %304 = vector.broadcast %cst_120 : f32 to vector<2x128xf32>
    %305 = arith.mulf %304, %303 : vector<2x128xf32>
    %cst_121 = arith.constant 5.000000e-01 : f32
    %306 = vector.broadcast %cst_121 : f32 to vector<2x128xf32>
    %307 = arith.addf %305, %306 : vector<2x128xf32>
    %308 = arith.mulf %297, %272 : vector<2x128xf32>
    %309 = arith.mulf %289, %299 : vector<2x128xf32>
    %310 = arith.addf %308, %309 : vector<2x128xf32>
    %311 = math.tanh %310 : vector<2x128xf32>
    %312 = arith.mulf %307, %311 : vector<2x128xf32>
    %c7 = arith.constant 7 : index
    %c0_122 = arith.constant 0 : index
    %c0_123 = arith.constant 0 : index
    %313 = vector.load %arg6[%c7, %c0_122, %c0_123] : memref<8x2x128xf32, #tpu.memory_space<vmem>>, vector<1x2x128xf32>
    %314 = vector.shape_cast %313 : vector<1x2x128xf32> to vector<2x128xf32>
    %315 = vector.shape_cast %312 : vector<2x128xf32> to vector<1x2x128xf32>
    tpu.vector_store %arg6[%c7, %c0_122, %c0_123], %315 {strides = array<i32>} : memref<8x2x128xf32, #tpu.memory_space<vmem>>, vector<1x2x128xf32>,
    %c0_124 = arith.constant 0 : index
    %c0_125 = arith.constant 0 : index
    %316 = vector.load %arg7[%c0_124, %c0_125] : memref<2x128xf32, #tpu.memory_space<vmem>>, vector<2x128xf32>
    tpu.vector_store %arg7[%c0_124, %c0_125], %312 {strides = array<i32>} : memref<2x128xf32, #tpu.memory_space<vmem>>, vector<2x128xf32>,
    %c0_126 = arith.constant 0 : index
    %c0_127 = arith.constant 0 : index
    %317 = vector.load %arg8[%c0_126, %c0_127] : memref<2x128xf32, #tpu.memory_space<vmem>>, vector<2x128xf32>
    tpu.vector_store %arg8[%c0_126, %c0_127], %310 {strides = array<i32>} : memref<2x128xf32, #tpu.memory_space<vmem>>, vector<2x128xf32>,
    return
  }
  func.func @transform_0(%arg0: i32, %arg1: i32) -> (i32, i32, i32) {
    %c0_i32 = arith.constant 0 : i32
    %c0_i32_0 = arith.constant 0 : i32
    return %arg1, %arg0, %c0_i32 : i32, i32, i32
  }
  func.func @transform_1(%arg0: i32, %arg1: i32) -> (i32, i32) {
    %c0_i32 = arith.constant 0 : i32
    %c0_i32_0 = arith.constant 0 : i32
    %c0_i32_1 = arith.constant 0 : i32
    return %c0_i32, %c0_i32_0 : i32, i32
  }
  func.func @transform_2(%arg0: i32, %arg1: i32) -> (i32, i32) {
    %c0_i32 = arith.constant 0 : i32
    %c0_i32_0 = arith.constant 0 : i32
    %c0_i32_1 = arith.constant 0 : i32
    return %c0_i32, %c0_i32_0 : i32, i32
  }
  func.func @transform_3(%arg0: i32, %arg1: i32) -> (i32, i32) {
    %c0_i32 = arith.constant 0 : i32
    %c0_i32_0 = arith.constant 0 : i32
    %c0_i32_1 = arith.constant 0 : i32
    return %c0_i32, %c0_i32_0 : i32, i32
  }
  func.func @transform_4(%arg0: i32, %arg1: i32) -> (i32, i32, i32) {
    %c0_i32 = arith.constant 0 : i32
    %c0_i32_0 = arith.constant 0 : i32
    return %arg1, %arg0, %c0_i32 : i32, i32, i32
  }
}

</mosaic_0001>

<llo_original>
// kernel: lstm_block_pallas.1
$region0: #{lstm_block_pallas.1}
  #allocation0 [shape = 'u32[]', space=smem, size = 0x4, offset = 0x4, fixed_abs, tag = 'smem constant byte address 0x4 - core index']
  #allocation1 [shape = 'u32[144,128]{1,0:T(1,128)}', space=vmem, size = 0x12000, scoped, tag = 'internal scratch']
  #allocation2 [shape = 'f32[2,128]{1,0:T(2,128)}', space=vmem, size = 0x400, scoped, tag = 'scratch operand']
  #allocation3 [shape = 'f32[2,128]{1,0:T(2,128)}', space=vmem, size = 0x400, scoped, tag = 'scratch operand']
  %s0 = inlined_call_operand.vmem [shape: f32[8,2,4], index: 0, kind: input, shape index: {}]
  %s1 = inlined_call_operand.vmem [shape: f32[4,512], index: 1, kind: input, shape index: {}]
  %s2 = inlined_call_operand.vmem [shape: f32[128,512], index: 2, kind: input, shape index: {}]
  %s3 = inlined_call_operand.vmem [shape: f32[1,512], index: 3, kind: input, shape index: {}]
  %s4 = inlined_call_operand.vmem [shape: f32[8,2,128], index: 4, kind: output, shape index: {}]
  %s5 = sld [smem:[#allocation0]]
  $region30: #{lstm_block_pallas.1} parent=0
    _
  %s7 = ssub.s32 1, %s5
  %s8 = scalar_select 0, %s7, %s5
  // Predicated region
  $region2: #{lstm_block_pallas.1} parent=0 // pred_check
    _
  $region3: #{lstm_block_pallas.1} parent=0 // pred_check_branch
    %10 = sbr.rel (0) target = $region5
  $region4: #{lstm_block_pallas.1} parent=0 // pred_region
    _
  $region5: #{lstm_block_pallas.1} parent=0 // pred_fallthru
    _
  // Predicated region
  $region6: #{lstm_block_pallas.1} parent=0 // pred_check
    _
  $region7: #{lstm_block_pallas.1} parent=0 // pred_check_branch
    %12 = sbr.rel (0) target = $region9
  $region8: #{lstm_block_pallas.1} parent=0 // pred_region
    _
  $region9: #{lstm_block_pallas.1} parent=0 // pred_fallthru
    _
  // Predicated region
  $region10: #{lstm_block_pallas.1} parent=0 // pred_check
    _
  $region11: #{lstm_block_pallas.1} parent=0 // pred_check_branch
    %14 = sbr.rel (0) target = $region13
  $region12: #{lstm_block_pallas.1} parent=0 // pred_region
    _
  $region13: #{lstm_block_pallas.1} parent=0 // pred_fallthru
    _
  // Predicated region
  $region14: #{lstm_block_pallas.1} parent=0 // pred_check
    _
  $region15: #{lstm_block_pallas.1} parent=0 // pred_check_branch
    %16 = sbr.rel (0) target = $region17
  $region16: #{lstm_block_pallas.1} parent=0 // pred_region
    _
  $region17: #{lstm_block_pallas.1} parent=0 // pred_fallthru
    _
  %p17 = scmp.eq.s32.totalorder 0, 0
  // Predicated region
  $region18: #{lstm_block_pallas.1} parent=0 // pred_check
    %p18 = pneg %p17
  $region19: #{lstm_block_pallas.1} parent=0 // pred_check_branch
    %20 = sbr.rel (%p18) target = $region21
  $region20: #{lstm_block_pallas.1} parent=0 // pred_region
    %21 = vst [vmem:[#allocation2] sm:$0x3] 0.0
    %22 = vst [vmem:[#allocation3] sm:$0x3] 0.0
  $region21: #{lstm_block_pallas.1} parent=0 // pred_fallthru
    _
  %v23 = vld [vmem:[%s0] sm:$0x3]
  %v24 = vld [vmem:[%s0 + $0x2] sm:$0x3]
  %v25 = vld [vmem:[%s0 + $0x4] sm:$0x3]
  %v26 = vld [vmem:[%s0 + $0x6] sm:$0x3]
  %v27 = vld [vmem:[%s0 + $0x8] sm:$0x3]
  %v28 = vld [vmem:[%s0 + $0xa] sm:$0x3]
  %v29 = vld [vmem:[%s0 + $0xc] sm:$0x3]
  %v30 = vld [vmem:[%s0 + $0xe] sm:$0x3]
  %v31 = vld [vmem:[%s1] sm:$0xff]
  %v32 = vld [vmem:[%s1 + $0x8] sm:$0xff]
  %v33 = vld [vmem:[%s3] sm:$0xf]
  %v35 = vlaneseq
  %v36 = vshrl.u32 %v35, 7
  %v37 = vsub.s32 0, %v36
  %v38 = vrot.slane %v33, %v37
  %v39 = vlaneseq
  %v40 = vshrl.u32 %v39, 7
  %v41 = vsub.s32 1, %v40
  %v42 = vrot.slane %v33, %v41
  %v43 = vlaneseq
  %v44 = vshrl.u32 %v43, 7
  %v45 = vsub.s32 2, %v44
  %v46 = vrot.slane %v33, %v45
  %v47 = vlaneseq
  %v48 = vshrl.u32 %v47, 7
  %v49 = vsub.s32 3, %v48
  %v50 = vrot.slane %v33, %v49
  %v63 = vcombine.low %v23, %v24
  %v64 = vcombine.low %v25, %v26
  %v66 = vunpack.c.l.s4 1983009808
  %v67 = vunpack.c.0.s8 %v66
  %v68 = vlaneseq
  %v69 = vshrl.u32 %v68, 7
  %v70 = vsub.s32 %v67, %v69
  %v71 = vrot.slane %v63, %v70
  %v73 = vunpack.c.l.s4 1983009808
  %v74 = vunpack.c.0.s8 %v73
  %v75 = vlaneseq
  %v76 = vshrl.u32 %v75, 7
  %v77 = vsub.s32 %v74, %v76
  %v78 = vrot.slane %v64, %v77
  %v79 = vcombine.low %v71, %v78
  %v80 = vcombine.low %v27, %v28
  %v81 = vcombine.low %v29, %v30
  %v83 = vunpack.c.l.s4 1983009808
  %v84 = vunpack.c.0.s8 %v83
  %v85 = vlaneseq
  %v86 = vshrl.u32 %v85, 7
  %v87 = vsub.s32 %v84, %v86
  %v88 = vrot.slane %v80, %v87
  %v90 = vunpack.c.l.s4 1983009808
  %v91 = vunpack.c.0.s8 %v90
  %v92 = vlaneseq
  %v93 = vshrl.u32 %v92, 7
  %v94 = vsub.s32 %v91, %v93
  %v95 = vrot.slane %v81, %v94
  %v96 = vcombine.low %v88, %v95
  %v99 = vcombine.high %v31, %v31
  %v100 = vcombine.high %v32, %v32
  %vm101 = vcmask 31744
  %v102 = vsel %vm101, %v79, 0
  %v104 = vsel %vm101, %v96, 0
  %vm106 = vcmask 1043456
  %v107 = vsel %vm106, %v31, 0
  %v109 = vsel %vm106, %v99, 0
  %v111 = vsel %vm106, %v32, 0
  %v113 = vsel %vm106, %v100, 0
  %115 = vmatprep.subr.mxu0 %v109
  %116 = vmatpush1.msra.mxu0 %v107
  %117 = vmatprep.subr.mxu0 0.0
  %118 = vmatpush1.msra.mxu0 0.0
  %119 = vmatprep.subr.mxu0 0.0
  %120 = vmatpush1.msra.mxu0 0.0
  %121 = vmatprep.subr.mxu0 0.0
  %122 = vmatpush1.msra.mxu0 0.0
  %123 = vmatprep.subr.mxu0 0.0
  %124 = vmatpush1.msra.mxu0 0.0
  %125 = vmatprep.subr.mxu0 0.0
  %126 = vmatpush1.msra.mxu0 0.0
  %127 = vmatprep.subr.mxu0 0.0
  %128 = vmatpush1.msra.mxu0 0.0
  %129 = vmatprep.subr.mxu0 0.0
  %130 = vmatpush1.msra.mxu0 0.0
  %131 = vmatprep.subr.mxu0 0.0
  %132 = vmatpush1.msra.mxu0 0.0
  %133 = vmatprep.subr.mxu0 0.0
  %134 = vmatpush1.msra.mxu0 0.0
  %135 = vmatprep.subr.mxu0 0.0
  %136 = vmatpush1.msra.mxu0 0.0
  %137 = vmatprep.subr.mxu0 0.0
  %138 = vmatpush1.msra.mxu0 0.0
  %139 = vmatprep.subr.mxu0 0.0
  %140 = vmatpush1.msra.mxu0 0.0
  %141 = vmatprep.subr.mxu0 0.0
  %142 = vmatpush1.msra.mxu0 0.0
  %143 = vmatprep.subr.mxu0 0.0
  %144 = vmatpush1.msra.mxu0 0.0
  %145 = vmatprep.subr.mxu0 0.0
  %146 = vmatpush1.msra.mxu0 0.0
  %147 = vmatprep.subr.mxu0 0.0
  %148 = vmatpush1.msra.mxu0 0.0
  %149 = vmatprep.subr.mxu0 0.0
  %150 = vmatpush1.msra.mxu0 0.0
  %151 = vmatprep.subr.mxu0 0.0
  %152 = vmatpush1.msra.mxu0 0.0
  %153 = vmatprep.subr.mxu0 0.0
  %154 = vmatpush1.msra.mxu0 0.0
  %155 = vmatprep.subr.mxu0 0.0
  %156 = vmatpush1.msra.mxu0 0.0
  %157 = vmatprep.subr.mxu0 0.0
  %158 = vmatpush1.msra.mxu0 0.0
  %159 = vmatprep.subr.mxu0 0.0
  %160 = vmatpush1.msra.mxu0 0.0
  %161 = vmatprep.subr.mxu0 0.0
  %162 = vmatpush1.msra.mxu0 0.0
  %163 = vmatprep.subr.mxu0 0.0
  %164 = vmatpush1.msra.mxu0 0.0
  %165 = vmatprep.subr.mxu0 0.0
  %166 = vmatpush1.msra.mxu0 0.0
  %167 = vmatprep.subr.mxu0 0.0
  %168 = vmatpush1.msra.mxu0 0.0
  %169 = vmatprep.subr.mxu0 0.0
  %170 = vmatpush1.msra.mxu0 0.0
  %171 = vmatprep.subr.mxu0 0.0
  %172 = vmatpush1.msra.mxu0 0.0
  %173 = vmatprep.subr.mxu0 0.0
  %174 = vmatpush1.msra.mxu0 0.0
  %175 = vmatprep.subr.mxu0 0.0
  %176 = vmatpush1.msra.mxu0 0.0
  %177 = vmatprep.subr.mxu0 0.0
  %178 = vmatpush1.msra.mxu0 0.0
  %179 = vmatprep.mubr.f32.mxu0 0.0
  %180 = vmatmul.mubr.f32.gmra.mrb[0].mxu0 %v102
  %v181 = vpop.f32.mrb[0].mxu0
  %v182 = vadd.f32 %v38, %v181
  %v183 = vpop.f32.mrb[0].mxu0
  %v184 = vadd.f32 %v42, %v183
  %185 = vmatprep.mubr.f32.mxu0 0.0
  %186 = vmatmul.mubr.f32.gmra.mrb[0].mxu0 %v104
  %v187 = vpop.f32.mrb[0].mxu0
  %v188 = vadd.f32 %v38, %v187
  %v189 = vpop.f32.mrb[0].mxu0
  %v190 = vadd.f32 %v42, %v189
  %191 = vdwg.mxu0
  %192 = vmatprep.subr.mxu0 %v113
  %193 = vmatpush1.msra.mxu0 %v111
  %194 = vmatprep.subr.mxu0 0.0
  %195 = vmatpush1.msra.mxu0 0.0
  %196 = vmatprep.subr.mxu0 0.0
  %197 = vmatpush1.msra.mxu0 0.0
  %198 = vmatprep.subr.mxu0 0.0
  %199 = vmatpush1.msra.mxu0 0.0
  %200 = vmatprep.subr.mxu0 0.0
  %201 = vmatpush1.msra.mxu0 0.0
  %202 = vmatprep.subr.mxu0 0.0
  %203 = vmatpush1.msra.mxu0 0.0
  %204 = vmatprep.subr.mxu0 0.0
  %205 = vmatpush1.msra.mxu0 0.0
  %206 = vmatprep.subr.mxu0 0.0
  %207 = vmatpush1.msra.mxu0 0.0
  %208 = vmatprep.subr.mxu0 0.0
  %209 = vmatpush1.msra.mxu0 0.0
  %210 = vmatprep.subr.mxu0 0.0
  %211 = vmatpush1.msra.mxu0 0.0
  %212 = vmatprep.subr.mxu0 0.0
  %213 = vmatpush1.msra.mxu0 0.0
  %214 = vmatprep.subr.mxu0 0.0
  %215 = vmatpush1.msra.mxu0 0.0
  %216 = vmatprep.subr.mxu0 0.0
  %217 = vmatpush1.msra.mxu0 0.0
  %218 = vmatprep.subr.mxu0 0.0
  %219 = vmatpush1.msra.mxu0 0.0
  %220 = vmatprep.subr.mxu0 0.0
  %221 = vmatpush1.msra.mxu0 0.0
  %222 = vmatprep.subr.mxu0 0.0
  %223 = vmatpush1.msra.mxu0 0.0
  %224 = vmatprep.subr.mxu0 0.0
  %225 = vmatpush1.msra.mxu0 0.0
  %226 = vmatprep.subr.mxu0 0.0
  %227 = vmatpush1.msra.mxu0 0.0
  %228 = vmatprep.subr.mxu0 0.0
  %229 = vmatpush1.msra.mxu0 0.0
  %230 = vmatprep.subr.mxu0 0.0
  %231 = vmatpush1.msra.mxu0 0.0
  %232 = vmatprep.subr.mxu0 0.0
  %233 = vmatpush1.msra.mxu0 0.0
  %234 = vmatprep.subr.mxu0 0.0
  %235 = vmatpush1.msra.mxu0 0.0
  %236 = vmatprep.subr.mxu0 0.0
  %237 = vmatpush1.msra.mxu0 0.0
  %238 = vmatprep.subr.mxu0 0.0
  %239 = vmatpush1.msra.mxu0 0.0
  %240 = vmatprep.subr.mxu0 0.0
  %241 = vmatpush1.msra.mxu0 0.0
  %242 = vmatprep.subr.mxu0 0.0
  %243 = vmatpush1.msra.mxu0 0.0
  %244 = vmatprep.subr.mxu0 0.0
  %245 = vmatpush1.msra.mxu0 0.0
  %246 = vmatprep.subr.mxu0 0.0
  %247 = vmatpush1.msra.mxu0 0.0
  %248 = vmatprep.subr.mxu0 0.0
  %249 = vmatpush1.msra.mxu0 0.0
  %250 = vmatprep.subr.mxu0 0.0
  %251 = vmatpush1.msra.mxu0 0.0
  %252 = vmatprep.subr.mxu0 0.0
  %253 = vmatpush1.msra.mxu0 0.0
  %254 = vmatprep.subr.mxu0 0.0
  %255 = vmatpush1.msra.mxu0 0.0
  %256 = vmatprep.mubr.f32.mxu0 0.0
  %257 = vmatmul.mubr.f32.gmra.mrb[0].mxu0 %v102
  %v258 = vpop.f32.mrb[0].mxu0
  %v259 = vadd.f32 %v46, %v258
  %v260 = vpop.f32.mrb[0].mxu0
  %v261 = vadd.f32 %v50, %v260
  %262 = vmatprep.mubr.f32.mxu0 0.0
  %263 = vmatmul.mubr.f32.gmra.mrb[0].mxu0 %v104
  %v264 = vpop.f32.mrb[0].mxu0
  %v265 = vadd.f32 %v46, %v264
  %v266 = vpop.f32.mrb[0].mxu0
  %v267 = vadd.f32 %v50, %v266
  %268 = vdwg.mxu0
  %v269 = vld [vmem:[#allocation2] sm:$0x3]
  %v270 = vld [vmem:[#allocation3] sm:$0x3]
  %v271 = vld [vmem:[%s2] sm:$0xff]
  %v272 = vld [vmem:[%s2 + $0x8] sm:$0xff]
  %v273 = vld [vmem:[%s2 + $0x10] sm:$0xff]
  %v274 = vld [vmem:[%s2 + $0x18] sm:$0xff]
  %v275 = vld [vmem:[%s2 + $0x20] sm:$0xff]
  %v276 = vld [vmem:[%s2 + $0x28] sm:$0xff]
  %v277 = vld [vmem:[%s2 + $0x30] sm:$0xff]
  %v278 = vld [vmem:[%s2 + $0x38] sm:$0xff]
  %v279 = vld [vmem:[%s2 + $0x40] sm:$0xff]
  %v280 = vld [vmem:[%s2 + $0x48] sm:$0xff]
  %v281 = vld [vmem:[%s2 + $0x50] sm:$0xff]
  %v282 = vld [vmem:[%s2 + $0x58] sm:$0xff]
  %v283 = vld [vmem:[%s2 + $0x60] sm:$0xff]
  %v284 = vld [vmem:[%s2 + $0x68] sm:$0xff]
  %v285 = vld [vmem:[%s2 + $0x70] sm:$0xff]
  %v286 = vld [vmem:[%s2 + $0x78] sm:$0xff]
  %v287 = vld [vmem:[%s2 + $0x80] sm:$0xff]
  %v288 = vld [vmem:[%s2 + $0x88] sm:$0xff]
  %v289 = vld [vmem:[%s2 + $0x90] sm:$0xff]
  %v290 = vld [vmem:[%s2 + $0x98] sm:$0xff]
  %v291 = vld [vmem:[%s2 + $0xa0] sm:$0xff]
  %v292 = vld [vmem:[%s2 + $0xa8] sm:$0xff]
  %v293 = vld [vmem:[%s2 + $0xb0] sm:$0xff]
  %v294 = vld [vmem:[%s2 + $0xb8] sm:$0xff]
  %v295 = vld [vmem:[%s2 + $0xc0] sm:$0xff]
  %v296 = vld [vmem:[%s2 + $0xc8] sm:$0xff]
  %v297 = vld [vmem:[%s2 + $0xd0] sm:$0xff]
  %v298 = vld [vmem:[%s2 + $0xd8] sm:$0xff]
  %v299 = vld [vmem:[%s2 + $0xe0] sm:$0xff]
  %v300 = vld [vmem:[%s2 + $0xe8] sm:$0xff]
  %v301 = vld [vmem:[%s2 + $0xf0] sm:$0xff]
  %v302 = vld [vmem:[%s2 + $0xf8] sm:$0xff]
  %v303 = vld [vmem:[%s2 + $0x100] sm:$0xff]
  %v304 = vld [vmem:[%s2 + $0x108] sm:$0xff]
  %v305 = vld [vmem:[%s2 + $0x110] sm:$0xff]
  %v306 = vld [vmem:[%s2 + $0x118] sm:$0xff]
  %v307 = vld [vmem:[%s2 + $0x120] sm:$0xff]
  %v308 = vld [vmem:[%s2 + $0x128] sm:$0xff]
  %v309 = vld [vmem:[%s2 + $0x130] sm:$0xff]
  %v310 = vld [vmem:[%s2 + $0x138] sm:$0xff]
  %v311 = vld [vmem:[%s2 + $0x140] sm:$0xff]
  %v312 = vld [vmem:[%s2 + $0x148] sm:$0xff]
  %v313 = vld [vmem:[%s2 + $0x150] sm:$0xff]
  %v314 = vld [vmem:[%s2 + $0x158] sm:$0xff]
  %v315 = vld [vmem:[%s2 + $0x160] sm:$0xff]
  %v316 = vld [vmem:[%s2 + $0x168] sm:$0xff]
  %v317 = vld [vmem:[%s2 + $0x170] sm:$0xff]
  %v318 = vld [vmem:[%s2 + $0x178] sm:$0xff]
  %v319 = vld [vmem:[%s2 + $0x180] sm:$0xff]
  %v320 = vld [vmem:[%s2 + $0x188] sm:$0xff]
  %v321 = vld [vmem:[%s2 + $0x190] sm:$0xff]
  %v322 = vld [vmem:[%s2 + $0x198] sm:$0xff]
  %v323 = vld [vmem:[%s2 + $0x1a0] sm:$0xff]
  %v324 = vld [vmem:[%s2 + $0x1a8] sm:$0xff]
  %v325 = vld [vmem:[%s2 + $0x1b0] sm:$0xff]
  %v326 = vld [vmem:[%s2 + $0x1b8] sm:$0xff]
  %v327 = vld [vmem:[%s2 + $0x1c0] sm:$0xff]
  %v328 = vld [vmem:[%s2 + $0x1c8] sm:$0xff]
  %v329 = vld [vmem:[%s2 + $0x1d0] sm:$0xff]
  %v330 = vld [vmem:[%s2 + $0x1d8] sm:$0xff]
  %v331 = vld [vmem:[%s2 + $0x1e0] sm:$0xff]
  %v332 = vld [vmem:[%s2 + $0x1e8] sm:$0xff]
  %v333 = vld [vmem:[%s2 + $0x1f0] sm:$0xff]
  %v334 = vld [vmem:[%s2 + $0x1f8] sm:$0xff]
  %335 = vmatprep.subr.mxu0 %v272
  %336 = vmatpush1.msra.mxu0 %v271
  %337 = vmatprep.subr.mxu0 %v276
  %338 = vmatpush1.msra.mxu0 %v275
  %339 = vmatprep.subr.mxu0 %v280
  %340 = vmatpush1.msra.mxu0 %v279
  %341 = vmatprep.subr.mxu0 %v284
  %342 = vmatpush1.msra.mxu0 %v283
  %343 = vmatprep.subr.mxu0 %v288
  %344 = vmatpush1.msra.mxu0 %v287
  %345 = vmatprep.subr.mxu0 %v292
  %346 = vmatpush1.msra.mxu0 %v291
  %347 = vmatprep.subr.mxu0 %v296
  %348 = vmatpush1.msra.mxu0 %v295
  %349 = vmatprep.subr.mxu0 %v300
  %350 = vmatpush1.msra.mxu0 %v299
  %351 = vmatprep.subr.mxu0 %v304
  %352 = vmatpush1.msra.mxu0 %v303
  %353 = vmatprep.subr.mxu0 %v308
  %354 = vmatpush1.msra.mxu0 %v307
  %355 = vmatprep.subr.mxu0 %v312
  %356 = vmatpush1.msra.mxu0 %v311
  %357 = vmatprep.subr.mxu0 %v316
  %358 = vmatpush1.msra.mxu0 %v315
  %359 = vmatprep.subr.mxu0 %v320
  %360 = vmatpush1.msra.mxu0 %v319
  %361 = vmatprep.subr.mxu0 %v324
  %362 = vmatpush1.msra.mxu0 %v323
  %363 = vmatprep.subr.mxu0 %v328
  %364 = vmatpush1.msra.mxu0 %v327
  %365 = vmatprep.subr.mxu0 %v332
  %366 = vmatpush1.msra.mxu0 %v331
  %367 = vmatprep.subr.mxu0 0.0
  %368 = vmatpush1.msra.mxu0 0.0
  %369 = vmatprep.subr.mxu0 0.0
  %370 = vmatpush1.msra.mxu0 0.0
  %371 = vmatprep.subr.mxu0 0.0
  %372 = vmatpush1.msra.mxu0 0.0
  %373 = vmatprep.subr.mxu0 0.0
  %374 = vmatpush1.msra.mxu0 0.0
  %375 = vmatprep.subr.mxu0 0.0
  %376 = vmatpush1.msra.mxu0 0.0
  %377 = vmatprep.subr.mxu0 0.0
  %378 = vmatpush1.msra.mxu0 0.0
  %379 = vmatprep.subr.mxu0 0.0
  %380 = vmatpush1.msra.mxu0 0.0
  %381 = vmatprep.subr.mxu0 0.0
  %382 = vmatpush1.msra.mxu0 0.0
  %383 = vmatprep.subr.mxu0 0.0
  %384 = vmatpush1.msra.mxu0 0.0
  %385 = vmatprep.subr.mxu0 0.0
  %386 = vmatpush1.msra.mxu0 0.0
  %387 = vmatprep.subr.mxu0 0.0
  %388 = vmatpush1.msra.mxu0 0.0
  %389 = vmatprep.subr.mxu0 0.0
  %390 = vmatpush1.msra.mxu0 0.0
  %391 = vmatprep.subr.mxu0 0.0
  %392 = vmatpush1.msra.mxu0 0.0
  %393 = vmatprep.subr.mxu0 0.0
  %394 = vmatpush1.msra.mxu0 0.0
  %395 = vmatprep.subr.mxu0 0.0
  %396 = vmatpush1.msra.mxu0 0.0
  %397 = vmatprep.subr.mxu0 0.0
  %398 = vmatpush1.msra.mxu0 0.0
  %399 = vmatprep.mubr.f32.mxu0 0.0
  %400 = vmatmul.mubr.f32.gmra.mrb[0].mxu0 %v269
  %v401 = vpop.f32.mrb[0].mxu0
  %v402 = vadd.f32 0.0, %v401
  %v403 = vpop.f32.mrb[0].mxu0
  %v404 = vadd.f32 0.0, %v403
  %405 = vdwg.mxu0
  %406 = vmatprep.subr.mxu0 %v274
  %407 = vmatpush1.msra.mxu0 %v273
  %408 = vmatprep.subr.mxu0 %v278
  %409 = vmatpush1.msra.mxu0 %v277
  %410 = vmatprep.subr.mxu0 %v282
  %411 = vmatpush1.msra.mxu0 %v281
  %412 = vmatprep.subr.mxu0 %v286
  %413 = vmatpush1.msra.mxu0 %v285
  %414 = vmatprep.subr.mxu0 %v290
  %415 = vmatpush1.msra.mxu0 %v289
  %416 = vmatprep.subr.mxu0 %v294
  %417 = vmatpush1.msra.mxu0 %v293
  %418 = vmatprep.subr.mxu0 %v298
  %419 = vmatpush1.msra.mxu0 %v297
  %420 = vmatprep.subr.mxu0 %v302
  %421 = vmatpush1.msra.mxu0 %v301
  %422 = vmatprep.subr.mxu0 %v306
  %423 = vmatpush1.msra.mxu0 %v305
  %424 = vmatprep.subr.mxu0 %v310
  %425 = vmatpush1.msra.mxu0 %v309
  %426 = vmatprep.subr.mxu0 %v314
  %427 = vmatpush1.msra.mxu0 %v313
  %428 = vmatprep.subr.mxu0 %v318
  %429 = vmatpush1.msra.mxu0 %v317
  %430 = vmatprep.subr.mxu0 %v322
  %431 = vmatpush1.msra.mxu0 %v321
  %432 = vmatprep.subr.mxu0 %v326
  %433 = vmatpush1.msra.mxu0 %v325
  %434 = vmatprep.subr.mxu0 %v330
  %435 = vmatpush1.msra.mxu0 %v329
  %436 = vmatprep.subr.mxu0 %v334
  %437 = vmatpush1.msra.mxu0 %v333
  %438 = vmatprep.subr.mxu0 0.0
  %439 = vmatpush1.msra.mxu0 0.0
  %440 = vmatprep.subr.mxu0 0.0
  %441 = vmatpush1.msra.mxu0 0.0
  %442 = vmatprep.subr.mxu0 0.0
  %443 = vmatpush1.msra.mxu0 0.0
  %444 = vmatprep.subr.mxu0 0.0
  %445 = vmatpush1.msra.mxu0 0.0
  %446 = vmatprep.subr.mxu0 0.0
  %447 = vmatpush1.msra.mxu0 0.0
  %448 = vmatprep.subr.mxu0 0.0
  %449 = vmatpush1.msra.mxu0 0.0
  %450 = vmatprep.subr.mxu0 0.0
  %451 = vmatpush1.msra.mxu0 0.0
  %452 = vmatprep.subr.mxu0 0.0
  %453 = vmatpush1.msra.mxu0 0.0
  %454 = vmatprep.subr.mxu0 0.0
  %455 = vmatpush1.msra.mxu0 0.0
  %456 = vmatprep.subr.mxu0 0.0
  %457 = vmatpush1.msra.mxu0 0.0
  %458 = vmatprep.subr.mxu0 0.0
  %459 = vmatpush1.msra.mxu0 0.0
  %460 = vmatprep.subr.mxu0 0.0
  %461 = vmatpush1.msra.mxu0 0.0
  %462 = vmatprep.subr.mxu0 0.0
  %463 = vmatpush1.msra.mxu0 0.0
  %464 = vmatprep.subr.mxu0 0.0
  %465 = vmatpush1.msra.mxu0 0.0
  %466 = vmatprep.subr.mxu0 0.0
  %467 = vmatpush1.msra.mxu0 0.0
  %468 = vmatprep.subr.mxu0 0.0
  %469 = vmatpush1.msra.mxu0 0.0
  %470 = vmatprep.mubr.f32.mxu0 0.0
  %471 = vmatmul.mubr.f32.gmra.mrb[0].mxu0 %v269
  %v472 = vpop.f32.mrb[0].mxu0
  %v473 = vadd.f32 0.0, %v472
  %v474 = vpop.f32.mrb[0].mxu0
  %v475 = vadd.f32 0.0, %v474
  %476 = vdwg.mxu0
  %v477 = vadd.f32 %v182, %v402
  %v478 = vadd.f32 %v184, %v404
  %v479 = vadd.f32 %v259, %v473
  %v480 = vadd.f32 %v261, %v475
  %v481 = vmul.f32 %v477, 0.5
  %v482 = vtanh.pop %v481
  %v483 = vmul.f32 %v482, 0.5
  %v484 = vadd.f32 %v483, 0.5
  %v485 = vmul.f32 %v478, 0.5
  %v486 = vtanh.pop %v485
  %v487 = vmul.f32 %v486, 0.5
  %v488 = vadd.f32 %v487, 0.5
  %v489 = vtanh.pop %v479
  %v490 = vmul.f32 %v480, 0.5
  %v491 = vtanh.pop %v490
  %v492 = vmul.f32 %v491, 0.5
  %v493 = vadd.f32 %v492, 0.5
  %v494 = vmul.f32 %v488, %v270
  %v495 = vmul.f32 %v484, %v489
  %v496 = vadd.f32 %v494, %v495
  %v497 = vtanh.pop %v496
  %v498 = vmul.f32 %v493, %v497
  %499 = vst [vmem:[%s4] sm:$0x3] %v498
  %v500 = vld [vmem:[%s2] sm:$0xff]
  %v501 = vld [vmem:[%s2 + $0x8] sm:$0xff]
  %v502 = vld [vmem:[%s2 + $0x10] sm:$0xff]
  %v503 = vld [vmem:[%s2 + $0x18] sm:$0xff]
  %v504 = vld [vmem:[%s2 + $0x20] sm:$0xff]
  %v505 = vld [vmem:[%s2 + $0x28] sm:$0xff]
  %v506 = vld [vmem:[%s2 + $0x30] sm:$0xff]
  %v507 = vld [vmem:[%s2 + $0x38] sm:$0xff]
  %v508 = vld [vmem:[%s2 + $0x40] sm:$0xff]
  %v509 = vld [vmem:[%s2 + $0x48] sm:$0xff]
  %v510 = vld [vmem:[%s2 + $0x50] sm:$0xff]
  %v511 = vld [vmem:[%s2 + $0x58] sm:$0xff]
  %v512 = vld [vmem:[%s2 + $0x60] sm:$0xff]
  %v513 = vld [vmem:[%s2 + $0x68] sm:$0xff]
  %v514 = vld [vmem:[%s2 + $0x70] sm:$0xff]
  %v515 = vld [vmem:[%s2 + $0x78] sm:$0xff]
  %v516 = vld [vmem:[%s2 + $0x80] sm:$0xff]
  %v517 = vld [vmem:[%s2 + $0x88] sm:$0xff]
  %v518 = vld [vmem:[%s2 + $0x90] sm:$0xff]
  %v519 = vld [vmem:[%s2 + $0x98] sm:$0xff]
  %v520 = vld [vmem:[%s2 + $0xa0] sm:$0xff]
  %v521 = vld [vmem:[%s2 + $0xa8] sm:$0xff]
  %v522 = vld [vmem:[%s2 + $0xb0] sm:$0xff]
  %v523 = vld [vmem:[%s2 + $0xb8] sm:$0xff]
  %v524 = vld [vmem:[%s2 + $0xc0] sm:$0xff]
  %v525 = vld [vmem:[%s2 + $0xc8] sm:$0xff]
  %v526 = vld [vmem:[%s2 + $0xd0] sm:$0xff]
  %v527 = vld [vmem:[%s2 + $0xd8] sm:$0xff]
  %v528 = vld [vmem:[%s2 + $0xe0] sm:$0xff]
  %v529 = vld [vmem:[%s2 + $0xe8] sm:$0xff]
  %v530 = vld [vmem:[%s2 + $0xf0] sm:$0xff]
  %v531 = vld [vmem:[%s2 + $0xf8] sm:$0xff]
  %v532 = vld [vmem:[%s2 + $0x100] sm:$0xff]
  %v533 = vld [vmem:[%s2 + $0x108] sm:$0xff]
  %v534 = vld [vmem:[%s2 + $0x110] sm:$0xff]
  %v535 = vld [vmem:[%s2 + $0x118] sm:$0xff]
  %v536 = vld [vmem:[%s2 + $0x120] sm:$0xff]
  %v537 = vld [vmem:[%s2 + $0x128] sm:$0xff]
  %v538 = vld [vmem:[%s2 + $0x130] sm:$0xff]
  %v539 = vld [vmem:[%s2 + $0x138] sm:$0xff]
  %v540 = vld [vmem:[%s2 + $0x140] sm:$0xff]
  %v541 = vld [vmem:[%s2 + $0x148] sm:$0xff]
  %v542 = vld [vmem:[%s2 + $0x150] sm:$0xff]
  %v543 = vld [vmem:[%s2 + $0x158] sm:$0xff]
  %v544 = vld [vmem:[%s2 + $0x160] sm:$0xff]
  %v545 = vld [vmem:[%s2 + $0x168] sm:$0xff]
  %v546 = vld [vmem:[%s2 + $0x170] sm:$0xff]
  %v547 = vld [vmem:[%s2 + $0x178] sm:$0xff]
  %v548 = vld [vmem:[%s2 + $0x180] sm:$0xff]
  %v549 = vld [vmem:[%s2 + $0x188] sm:$0xff]
  %v550 = vld [vmem:[%s2 + $0x190] sm:$0xff]
  %v551 = vld [vmem:[%s2 + $0x198] sm:$0xff]
  %v552 = vld [vmem:[%s2 + $0x1a0] sm:$0xff]
  %v553 = vld [vmem:[%s2 + $0x1a8] sm:$0xff]
  %v554 = vld [vmem:[%s2 + $0x1b0] sm:$0xff]
  %v555 = vld [vmem:[%s2 + $0x1b8] sm:$0xff]
  %v556 = vld [vmem:[%s2 + $0x1c0] sm:$0xff]
  %v557 = vld [vmem:[%s2 + $0x1c8] sm:$0xff]
  %v558 = vld [vmem:[%s2 + $0x1d0] sm:$0xff]
  %v559 = vld [vmem:[%s2 + $0x1d8] sm:$0xff]
  %v560 = vld [vmem:[%s2 + $0x1e0] sm:$0xff]
  %v561 = vld [vmem:[%s2 + $0x1e8] sm:$0xff]
  %v562 = vld [vmem:[%s2 + $0x1f0] sm:$0xff]
  %v563 = vld [vmem:[%s2 + $0x1f8] sm:$0xff]
  %564 = vmatprep.subr.mxu0 %v501
  %565 = vmatpush1.msra.mxu0 %v500
  %566 = vmatprep.subr.mxu0 %v505
  %567 = vmatpush1.msra.mxu0 %v504
  %568 = vmatprep.subr.mxu0 %v509
  %569 = vmatpush1.msra.mxu0 %v508
  %570 = vmatprep.subr.mxu0 %v513
  %571 = vmatpush1.msra.mxu0 %v512
  %572 = vmatprep.subr.mxu0 %v517
  %573 = vmatpush1.msra.mxu0 %v516
  %574 = vmatprep.subr.mxu0 %v521
  %575 = vmatpush1.msra.mxu0 %v520
  %576 = vmatprep.subr.mxu0 %v525
  %577 = vmatpush1.msra.mxu0 %v524
  %578 = vmatprep.subr.mxu0 %v529
  %579 = vmatpush1.msra.mxu0 %v528
  %580 = vmatprep.subr.mxu0 %v533
  %581 = vmatpush1.msra.mxu0 %v532
  %582 = vmatprep.subr.mxu0 %v537
  %583 = vmatpush1.msra.mxu0 %v536
  %584 = vmatprep.subr.mxu0 %v541
  %585 = vmatpush1.msra.mxu0 %v540
  %586 = vmatprep.subr.mxu0 %v545
  %587 = vmatpush1.msra.mxu0 %v544
  %588 = vmatprep.subr.mxu0 %v549
  %589 = vmatpush1.msra.mxu0 %v548
  %590 = vmatprep.subr.mxu0 %v553
  %591 = vmatpush1.msra.mxu0 %v552
  %592 = vmatprep.subr.mxu0 %v557
  %593 = vmatpush1.msra.mxu0 %v556
  %594 = vmatprep.subr.mxu0 %v561
  %595 = vmatpush1.msra.mxu0 %v560
  %596 = vmatprep.subr.mxu0 0.0
  %597 = vmatpush1.msra.mxu0 0.0
  %598 = vmatprep.subr.mxu0 0.0
  %599 = vmatpush1.msra.mxu0 0.0
  %600 = vmatprep.subr.mxu0 0.0
  %601 = vmatpush1.msra.mxu0 0.0
  %602 = vmatprep.subr.mxu0 0.0
  %603 = vmatpush1.msra.mxu0 0.0
  %604 = vmatprep.subr.mxu0 0.0
  %605 = vmatpush1.msra.mxu0 0.0
  %606 = vmatprep.subr.mxu0 0.0
  %607 = vmatpush1.msra.mxu0 0.0
  %608 = vmatprep.subr.mxu0 0.0
  %609 = vmatpush1.msra.mxu0 0.0
  %610 = vmatprep.subr.mxu0 0.0
  %611 = vmatpush1.msra.mxu0 0.0
  %612 = vmatprep.subr.mxu0 0.0
  %613 = vmatpush1.msra.mxu0 0.0
  %614 = vmatprep.subr.mxu0 0.0
  %615 = vmatpush1.msra.mxu0 0.0
  %616 = vmatprep.subr.mxu0 0.0
  %617 = vmatpush1.msra.mxu0 0.0
  %618 = vmatprep.subr.mxu0 0.0
  %619 = vmatpush1.msra.mxu0 0.0
  %620 = vmatprep.subr.mxu0 0.0
  %621 = vmatpush1.msra.mxu0 0.0
  %622 = vmatprep.subr.mxu0 0.0
  %623 = vmatpush1.msra.mxu0 0.0
  %624 = vmatprep.subr.mxu0 0.0
  %625 = vmatpush1.msra.mxu0 0.0
  %626 = vmatprep.subr.mxu0 0.0
  %627 = vmatpush1.msra.mxu0 0.0
  %628 = vmatprep.mubr.f32.mxu0 0.0
  %629 = vmatmul.mubr.f32.gmra.mrb[0].mxu0 %v498
  %v630 = vpop.f32.mrb[0].mxu0
  %v631 = vadd.f32 0.0, %v630
  %v632 = vpop.f32.mrb[0].mxu0
  %v633 = vadd.f32 0.0, %v632
  %634 = vdwg.mxu0
  %635 = vmatprep.subr.mxu0 %v503
  %636 = vmatpush1.msra.mxu0 %v502
  %637 = vmatprep.subr.mxu0 %v507
  %638 = vmatpush1.msra.mxu0 %v506
  %639 = vmatprep.subr.mxu0 %v511
  %640 = vmatpush1.msra.mxu0 %v510
  %641 = vmatprep.subr.mxu0 %v515
  %642 = vmatpush1.msra.mxu0 %v514
  %643 = vmatprep.subr.mxu0 %v519
  %644 = vmatpush1.msra.mxu0 %v518
  %645 = vmatprep.subr.mxu0 %v523
  %646 = vmatpush1.msra.mxu0 %v522
  %647 = vmatprep.subr.mxu0 %v527
  %648 = vmatpush1.msra.mxu0 %v526
  %649 = vmatprep.subr.mxu0 %v531
  %650 = vmatpush1.msra.mxu0 %v530
  %651 = vmatprep.subr.mxu0 %v535
  %652 = vmatpush1.msra.mxu0 %v534
  %653 = vmatprep.subr.mxu0 %v539
  %654 = vmatpush1.msra.mxu0 %v538
  %655 = vmatprep.subr.mxu0 %v543
  %656 = vmatpush1.msra.mxu0 %v542
  %657 = vmatprep.subr.mxu0 %v547
  %658 = vmatpush1.msra.mxu0 %v546
  %659 = vmatprep.subr.mxu0 %v551
  %660 = vmatpush1.msra.mxu0 %v550
  %661 = vmatprep.subr.mxu0 %v555
  %662 = vmatpush1.msra.mxu0 %v554
  %663 = vmatprep.subr.mxu0 %v559
  %664 = vmatpush1.msra.mxu0 %v558
  %665 = vmatprep.subr.mxu0 %v563
  %666 = vmatpush1.msra.mxu0 %v562
  %667 = vmatprep.subr.mxu0 0.0
  %668 = vmatpush1.msra.mxu0 0.0
  %669 = vmatprep.subr.mxu0 0.0
  %670 = vmatpush1.msra.mxu0 0.0
  %671 = vmatprep.subr.mxu0 0.0
  %672 = vmatpush1.msra.mxu0 0.0
  %673 = vmatprep.subr.mxu0 0.0
  %674 = vmatpush1.msra.mxu0 0.0
  %675 = vmatprep.subr.mxu0 0.0
  %676 = vmatpush1.msra.mxu0 0.0
  %677 = vmatprep.subr.mxu0 0.0
  %678 = vmatpush1.msra.mxu0 0.0
  %679 = vmatprep.subr.mxu0 0.0
  %680 = vmatpush1.msra.mxu0 0.0
  %681 = vmatprep.subr.mxu0 0.0
  %682 = vmatpush1.msra.mxu0 0.0
  %683 = vmatprep.subr.mxu0 0.0
  %684 = vmatpush1.msra.mxu0 0.0
  %685 = vmatprep.subr.mxu0 0.0
  %686 = vmatpush1.msra.mxu0 0.0
  %687 = vmatprep.subr.mxu0 0.0
  %688 = vmatpush1.msra.mxu0 0.0
  %689 = vmatprep.subr.mxu0 0.0
  %690 = vmatpush1.msra.mxu0 0.0
  %691 = vmatprep.subr.mxu0 0.0
  %692 = vmatpush1.msra.mxu0 0.0
  %693 = vmatprep.subr.mxu0 0.0
  %694 = vmatpush1.msra.mxu0 0.0
  %695 = vmatprep.subr.mxu0 0.0
  %696 = vmatpush1.msra.mxu0 0.0
  %697 = vmatprep.subr.mxu0 0.0
  %698 = vmatpush1.msra.mxu0 0.0
  %699 = vmatprep.mubr.f32.mxu0 0.0
  %700 = vmatmul.mubr.f32.gmra.mrb[0].mxu0 %v498
  %v701 = vpop.f32.mrb[0].mxu0
  %v702 = vadd.f32 0.0, %v701
  %v703 = vpop.f32.mrb[0].mxu0
  %v704 = vadd.f32 0.0, %v703
  %705 = vdwg.mxu0
  %v710 = vrot.slane %v631, 6
  %v711 = vrot.slane %v633, 6
  %v712 = vrot.slane %v702, 6
  %v713 = vrot.slane %v704, 6
  %v718 = vadd.f32 %v182, %v710
  %v719 = vadd.f32 %v184, %v711
  %v720 = vadd.f32 %v259, %v712
  %v721 = vadd.f32 %v261, %v713
  %v722 = vmul.f32 %v718, 0.5
  %v723 = vtanh.pop %v722
  %v724 = vmul.f32 %v723, 0.5
  %v725 = vadd.f32 %v724, 0.5
  %v726 = vmul.f32 %v719, 0.5
  %v727 = vtanh.pop %v726
  %v728 = vmul.f32 %v727, 0.5
  %v729 = vadd.f32 %v728, 0.5
  %v730 = vtanh.pop %v720
  %v731 = vmul.f32 %v721, 0.5
  %v732 = vtanh.pop %v731
  %v733 = vmul.f32 %v732, 0.5
  %v734 = vadd.f32 %v733, 0.5
  %v736 = vrot.slane %v496, 6
  %v738 = vmul.f32 %v729, %v736
  %v739 = vmul.f32 %v725, %v730
  %v740 = vadd.f32 %v738, %v739
  %v741 = vtanh.pop %v740
  %v742 = vmul.f32 %v734, %v741
  %s743 = scalar_lea.vmem %s4, 2
  %744 = vst [vmem:[%s743 - $0x2] sm:$0xc] %v742
  %v745 = vld [vmem:[%s2] sm:$0xff]
  %v746 = vld [vmem:[%s2 + $0x8] sm:$0xff]
  %v747 = vld [vmem:[%s2 + $0x10] sm:$0xff]
  %v748 = vld [vmem:[%s2 + $0x18] sm:$0xff]
  %v749 = vld [vmem:[%s2 + $0x20] sm:$0xff]
  %v750 = vld [vmem:[%s2 + $0x28] sm:$0xff]
  %v751 = vld [vmem:[%s2 + $0x30] sm:$0xff]
  %v752 = vld [vmem:[%s2 + $0x38] sm:$0xff]
  %v753 = vld [vmem:[%s2 + $0x40] sm:$0xff]
  %v754 = vld [vmem:[%s2 + $0x48] sm:$0xff]
  %v755 = vld [vmem:[%s2 + $0x50] sm:$0xff]
  %v756 = vld [vmem:[%s2 + $0x58] sm:$0xff]
  %v757 = vld [vmem:[%s2 + $0x60] sm:$0xff]
  %v758 = vld [vmem:[%s2 + $0x68] sm:$0xff]
  %v759 = vld [vmem:[%s2 + $0x70] sm:$0xff]
  %v760 = vld [vmem:[%s2 + $0x78] sm:$0xff]
  %v761 = vld [vmem:[%s2 + $0x80] sm:$0xff]
  %v762 = vld [vmem:[%s2 + $0x88] sm:$0xff]
  %v763 = vld [vmem:[%s2 + $0x90] sm:$0xff]
  %v764 = vld [vmem:[%s2 + $0x98] sm:$0xff]
  %v765 = vld [vmem:[%s2 + $0xa0] sm:$0xff]
  %v766 = vld [vmem:[%s2 + $0xa8] sm:$0xff]
  %v767 = vld [vmem:[%s2 + $0xb0] sm:$0xff]
  %v768 = vld [vmem:[%s2 + $0xb8] sm:$0xff]
  %v769 = vld [vmem:[%s2 + $0xc0] sm:$0xff]
  %v770 = vld [vmem:[%s2 + $0xc8] sm:$0xff]
  %v771 = vld [vmem:[%s2 + $0xd0] sm:$0xff]
  %v772 = vld [vmem:[%s2 + $0xd8] sm:$0xff]
  %v773 = vld [vmem:[%s2 + $0xe0] sm:$0xff]
  %v774 = vld [vmem:[%s2 + $0xe8] sm:$0xff]
  %v775 = vld [vmem:[%s2 + $0xf0] sm:$0xff]
  %v776 = vld [vmem:[%s2 + $0xf8] sm:$0xff]
  %v777 = vld [vmem:[%s2 + $0x100] sm:$0xff]
  %v778 = vld [vmem:[%s2 + $0x108] sm:$0xff]
  %v779 = vld [vmem:[%s2 + $0x110] sm:$0xff]
  %v780 = vld [vmem:[%s2 + $0x118] sm:$0xff]
  %v781 = vld [vmem:[%s2 + $0x120] sm:$0xff]
  %v782 = vld [vmem:[%s2 + $0x128] sm:$0xff]
  %v783 = vld [vmem:[%s2 + $0x130] sm:$0xff]
  %v784 = vld [vmem:[%s2 + $0x138] sm:$0xff]
  %v785 = vld [vmem:[%s2 + $0x140] sm:$0xff]
  %v786 = vld [vmem:[%s2 + $0x148] sm:$0xff]
  %v787 = vld [vmem:[%s2 + $0x150] sm:$0xff]
  %v788 = vld [vmem:[%s2 + $0x158] sm:$0xff]
  %v789 = vld [vmem:[%s2 + $0x160] sm:$0xff]
  %v790 = vld [vmem:[%s2 + $0x168] sm:$0xff]
  %v791 = vld [vmem:[%s2 + $0x170] sm:$0xff]
  %v792 = vld [vmem:[%s2 + $0x178] sm:$0xff]
  %v793 = vld [vmem:[%s2 + $0x180] sm:$0xff]
  %v794 = vld [vmem:[%s2 + $0x188] sm:$0xff]
  %v795 = vld [vmem:[%s2 + $0x190] sm:$0xff]
  %v796 = vld [vmem:[%s2 + $0x198] sm:$0xff]
  %v797 = vld [vmem:[%s2 + $0x1a0] sm:$0xff]
  %v798 = vld [vmem:[%s2 + $0x1a8] sm:$0xff]
  %v799 = vld [vmem:[%s2 + $0x1b0] sm:$0xff]
  %v800 = vld [vmem:[%s2 + $0x1b8] sm:$0xff]
  %v801 = vld [vmem:[%s2 + $0x1c0] sm:$0xff]
  %v802 = vld [vmem:[%s2 + $0x1c8] sm:$0xff]
  %v803 = vld [vmem:[%s2 + $0x1d0] sm:$0xff]
  %v804 = vld [vmem:[%s2 + $0x1d8] sm:$0xff]
  %v805 = vld [vmem:[%s2 + $0x1e0] sm:$0xff]
  %v806 = vld [vmem:[%s2 + $0x1e8] sm:$0xff]
  %v807 = vld [vmem:[%s2 + $0x1f0] sm:$0xff]
  %v808 = vld [vmem:[%s2 + $0x1f8] sm:$0xff]
  %v810 = vrot.slane %v742, 2
  %812 = vmatprep.subr.mxu0 %v746
  %813 = vmatpush1.msra.mxu0 %v745
  %814 = vmatprep.subr.mxu0 %v750
  %815 = vmatpush1.msra.mxu0 %v749
  %816 = vmatprep.subr.mxu0 %v754
  %817 = vmatpush1.msra.mxu0 %v753
  %818 = vmatprep.subr.mxu0 %v758
  %819 = vmatpush1.msra.mxu0 %v757
  %820 = vmatprep.subr.mxu0 %v762
  %821 = vmatpush1.msra.mxu0 %v761
  %822 = vmatprep.subr.mxu0 %v766
  %823 = vmatpush1.msra.mxu0 %v765
  %824 = vmatprep.subr.mxu0 %v770
  %825 = vmatpush1.msra.mxu0 %v769
  %826 = vmatprep.subr.mxu0 %v774
  %827 = vmatpush1.msra.mxu0 %v773
  %828 = vmatprep.subr.mxu0 %v778
  %829 = vmatpush1.msra.mxu0 %v777
  %830 = vmatprep.subr.mxu0 %v782
  %831 = vmatpush1.msra.mxu0 %v781
  %832 = vmatprep.subr.mxu0 %v786
  %833 = vmatpush1.msra.mxu0 %v785
  %834 = vmatprep.subr.mxu0 %v790
  %835 = vmatpush1.msra.mxu0 %v789
  %836 = vmatprep.subr.mxu0 %v794
  %837 = vmatpush1.msra.mxu0 %v793
  %838 = vmatprep.subr.mxu0 %v798
  %839 = vmatpush1.msra.mxu0 %v797
  %840 = vmatprep.subr.mxu0 %v802
  %841 = vmatpush1.msra.mxu0 %v801
  %842 = vmatprep.subr.mxu0 %v806
  %843 = vmatpush1.msra.mxu0 %v805
  %844 = vmatprep.subr.mxu0 0.0
  %845 = vmatpush1.msra.mxu0 0.0
  %846 = vmatprep.subr.mxu0 0.0
  %847 = vmatpush1.msra.mxu0 0.0
  %848 = vmatprep.subr.mxu0 0.0
  %849 = vmatpush1.msra.mxu0 0.0
  %850 = vmatprep.subr.mxu0 0.0
  %851 = vmatpush1.msra.mxu0 0.0
  %852 = vmatprep.subr.mxu0 0.0
  %853 = vmatpush1.msra.mxu0 0.0
  %854 = vmatprep.subr.mxu0 0.0
  %855 = vmatpush1.msra.mxu0 0.0
  %856 = vmatprep.subr.mxu0 0.0
  %857 = vmatpush1.msra.mxu0 0.0
  %858 = vmatprep.subr.mxu0 0.0
  %859 = vmatpush1.msra.mxu0 0.0
  %860 = vmatprep.subr.mxu0 0.0
  %861 = vmatpush1.msra.mxu0 0.0
  %862 = vmatprep.subr.mxu0 0.0
  %863 = vmatpush1.msra.mxu0 0.0
  %864 = vmatprep.subr.mxu0 0.0
  %865 = vmatpush1.msra.mxu0 0.0
  %866 = vmatprep.subr.mxu0 0.0
  %867 = vmatpush1.msra.mxu0 0.0
  %868 = vmatprep.subr.mxu0 0.0
  %869 = vmatpush1.msra.mxu0 0.0
  %870 = vmatprep.subr.mxu0 0.0
  %871 = vmatpush1.msra.mxu0 0.0
  %872 = vmatprep.subr.mxu0 0.0
  %873 = vmatpush1.msra.mxu0 0.0
  %874 = vmatprep.subr.mxu0 0.0
  %875 = vmatpush1.msra.mxu0 0.0
  %876 = vmatprep.mubr.f32.mxu0 0.0
  %877 = vmatmul.mubr.f32.gmra.mrb[0].mxu0 %v810
  %v878 = vpop.f32.mrb[0].mxu0
  %v879 = vadd.f32 0.0, %v878
  %v880 = vpop.f32.mrb[0].mxu0
  %v881 = vadd.f32 0.0, %v880
  %882 = vdwg.mxu0
  %883 = vmatprep.subr.mxu0 %v748
  %884 = vmatpush1.msra.mxu0 %v747
  %885 = vmatprep.subr.mxu0 %v752
  %886 = vmatpush1.msra.mxu0 %v751
  %887 = vmatprep.subr.mxu0 %v756
  %888 = vmatpush1.msra.mxu0 %v755
  %889 = vmatprep.subr.mxu0 %v760
  %890 = vmatpush1.msra.mxu0 %v759
  %891 = vmatprep.subr.mxu0 %v764
  %892 = vmatpush1.msra.mxu0 %v763
  %893 = vmatprep.subr.mxu0 %v768
  %894 = vmatpush1.msra.mxu0 %v767
  %895 = vmatprep.subr.mxu0 %v772
  %896 = vmatpush1.msra.mxu0 %v771
  %897 = vmatprep.subr.mxu0 %v776
  %898 = vmatpush1.msra.mxu0 %v775
  %899 = vmatprep.subr.mxu0 %v780
  %900 = vmatpush1.msra.mxu0 %v779
  %901 = vmatprep.subr.mxu0 %v784
  %902 = vmatpush1.msra.mxu0 %v783
  %903 = vmatprep.subr.mxu0 %v788
  %904 = vmatpush1.msra.mxu0 %v787
  %905 = vmatprep.subr.mxu0 %v792
  %906 = vmatpush1.msra.mxu0 %v791
  %907 = vmatprep.subr.mxu0 %v796
  %908 = vmatpush1.msra.mxu0 %v795
  %909 = vmatprep.subr.mxu0 %v800
  %910 = vmatpush1.msra.mxu0 %v799
  %911 = vmatprep.subr.mxu0 %v804
  %912 = vmatpush1.msra.mxu0 %v803
  %913 = vmatprep.subr.mxu0 %v808
  %914 = vmatpush1.msra.mxu0 %v807
  %915 = vmatprep.subr.mxu0 0.0
  %916 = vmatpush1.msra.mxu0 0.0
  %917 = vmatprep.subr.mxu0 0.0
  %918 = vmatpush1.msra.mxu0 0.0
  %919 = vmatprep.subr.mxu0 0.0
  %920 = vmatpush1.msra.mxu0 0.0
  %921 = vmatprep.subr.mxu0 0.0
  %922 = vmatpush1.msra.mxu0 0.0
  %923 = vmatprep.subr.mxu0 0.0
  %924 = vmatpush1.msra.mxu0 0.0
  %925 = vmatprep.subr.mxu0 0.0
  %926 = vmatpush1.msra.mxu0 0.0
  %927 = vmatprep.subr.mxu0 0.0
  %928 = vmatpush1.msra.mxu0 0.0
  %929 = vmatprep.subr.mxu0 0.0
  %930 = vmatpush1.msra.mxu0 0.0
  %931 = vmatprep.subr.mxu0 0.0
  %932 = vmatpush1.msra.mxu0 0.0
  %933 = vmatprep.subr.mxu0 0.0
  %934 = vmatpush1.msra.mxu0 0.0
  %935 = vmatprep.subr.mxu0 0.0
  %936 = vmatpush1.msra.mxu0 0.0
  %937 = vmatprep.subr.mxu0 0.0
  %938 = vmatpush1.msra.mxu0 0.0
  %939 = vmatprep.subr.mxu0 0.0
  %940 = vmatpush1.msra.mxu0 0.0
  %941 = vmatprep.subr.mxu0 0.0
  %942 = vmatpush1.msra.mxu0 0.0
  %943 = vmatprep.subr.mxu0 0.0
  %944 = vmatpush1.msra.mxu0 0.0
  %945 = vmatprep.subr.mxu0 0.0
  %946 = vmatpush1.msra.mxu0 0.0
  %947 = vmatprep.mubr.f32.mxu0 0.0
  %948 = vmatmul.mubr.f32.gmra.mrb[0].mxu0 %v810
  %v949 = vpop.f32.mrb[0].mxu0
  %v950 = vadd.f32 0.0, %v949
  %v951 = vpop.f32.mrb[0].mxu0
  %v952 = vadd.f32 0.0, %v951
  %953 = vdwg.mxu0
  %v958 = vrot.slane %v879, 4
  %v959 = vrot.slane %v881, 4
  %v960 = vrot.slane %v950, 4
  %v961 = vrot.slane %v952, 4
  %v966 = vadd.f32 %v182, %v958
  %v967 = vadd.f32 %v184, %v959
  %v968 = vadd.f32 %v259, %v960
  %v969 = vadd.f32 %v261, %v961
  %v970 = vmul.f32 %v966, 0.5
  %v971 = vtanh.pop %v970
  %v972 = vmul.f32 %v971, 0.5
  %v973 = vadd.f32 %v972, 0.5
  %v974 = vmul.f32 %v967, 0.5
  %v975 = vtanh.pop %v974
  %v976 = vmul.f32 %v975, 0.5
  %v977 = vadd.f32 %v976, 0.5
  %v978 = vtanh.pop %v968
  %v979 = vmul.f32 %v969, 0.5
  %v980 = vtanh.pop %v979
  %v981 = vmul.f32 %v980, 0.5
  %v982 = vadd.f32 %v981, 0.5
  %v984 = vrot.slane %v740, 6
  %v986 = vmul.f32 %v977, %v984
  %v987 = vmul.f32 %v973, %v978
  %v988 = vadd.f32 %v986, %v987
  %v989 = vtanh.pop %v988
  %v990 = vmul.f32 %v982, %v989
  %s991 = scalar_lea.vmem %s4, 4
  %992 = vst [vmem:[%s991 - $0x4] sm:$0x30] %v990
  %v993 = vld [vmem:[%s2] sm:$0xff]
  %v994 = vld [vmem:[%s2 + $0x8] sm:$0xff]
  %v995 = vld [vmem:[%s2 + $0x10] sm:$0xff]
  %v996 = vld [vmem:[%s2 + $0x18] sm:$0xff]
  %v997 = vld [vmem:[%s2 + $0x20] sm:$0xff]
  %v998 = vld [vmem:[%s2 + $0x28] sm:$0xff]
  %v999 = vld [vmem:[%s2 + $0x30] sm:$0xff]
  %v1000 = vld [vmem:[%s2 + $0x38] sm:$0xff]
  %v1001 = vld [vmem:[%s2 + $0x40] sm:$0xff]
  %v1002 = vld [vmem:[%s2 + $0x48] sm:$0xff]
  %v1003 = vld [vmem:[%s2 + $0x50] sm:$0xff]
  %v1004 = vld [vmem:[%s2 + $0x58] sm:$0xff]
  %v1005 = vld [vmem:[%s2 + $0x60] sm:$0xff]
  %v1006 = vld [vmem:[%s2 + $0x68] sm:$0xff]
  %v1007 = vld [vmem:[%s2 + $0x70] sm:$0xff]
  %v1008 = vld [vmem:[%s2 + $0x78] sm:$0xff]
  %v1009 = vld [vmem:[%s2 + $0x80] sm:$0xff]
  %v1010 = vld [vmem:[%s2 + $0x88] sm:$0xff]
  %v1011 = vld [vmem:[%s2 + $0x90] sm:$0xff]
  %v1012 = vld [vmem:[%s2 + $0x98] sm:$0xff]
  %v1013 = vld [vmem:[%s2 + $0xa0] sm:$0xff]
  %v1014 = vld [vmem:[%s2 + $0xa8] sm:$0xff]
  %v1015 = vld [vmem:[%s2 + $0xb0] sm:$0xff]
  %v1016 = vld [vmem:[%s2 + $0xb8] sm:$0xff]
  %v1017 = vld [vmem:[%s2 + $0xc0] sm:$0xff]
  %v1018 = vld [vmem:[%s2 + $0xc8] sm:$0xff]
  %v1019 = vld [vmem:[%s2 + $0xd0] sm:$0xff]
  %v1020 = vld [vmem:[%s2 + $0xd8] sm:$0xff]
  %v1021 = vld [vmem:[%s2 + $0xe0] sm:$0xff]
  %v1022 = vld [vmem:[%s2 + $0xe8] sm:$0xff]
  %v1023 = vld [vmem:[%s2 + $0xf0] sm:$0xff]
  %v1024 = vld [vmem:[%s2 + $0xf8] sm:$0xff]
  %v1025 = vld [vmem:[%s2 + $0x100] sm:$0xff]
  %v1026 = vld [vmem:[%s2 + $0x108] sm:$0xff]
  %v1027 = vld [vmem:[%s2 + $0x110] sm:$0xff]
  %v1028 = vld [vmem:[%s2 + $0x118] sm:$0xff]
  %v1029 = vld [vmem:[%s2 + $0x120] sm:$0xff]
  %v1030 = vld [vmem:[%s2 + $0x128] sm:$0xff]
  %v1031 = vld [vmem:[%s2 + $0x130] sm:$0xff]
  %v1032 = vld [vmem:[%s2 + $0x138] sm:$0xff]
  %v1033 = vld [vmem:[%s2 + $0x140] sm:$0xff]
  %v1034 = vld [vmem:[%s2 + $0x148] sm:$0xff]
  %v1035 = vld [vmem:[%s2 + $0x150] sm:$0xff]
  %v1036 = vld [vmem:[%s2 + $0x158] sm:$0xff]
  %v1037 = vld [vmem:[%s2 + $0x160] sm:$0xff]
  %v1038 = vld [vmem:[%s2 + $0x168] sm:$0xff]
  %v1039 = vld [vmem:[%s2 + $0x170] sm:$0xff]
  %v1040 = vld [vmem:[%s2 + $0x178] sm:$0xff]
  %v1041 = vld [vmem:[%s2 + $0x180] sm:$0xff]
  %v1042 = vld [vmem:[%s2 + $0x188] sm:$0xff]
  %v1043 = vld [vmem:[%s2 + $0x190] sm:$0xff]
  %v1044 = vld [vmem:[%s2 + $0x198] sm:$0xff]
  %v1045 = vld [vmem:[%s2 + $0x1a0] sm:$0xff]
  %v1046 = vld [vmem:[%s2 + $0x1a8] sm:$0xff]
  %v1047 = vld [vmem:[%s2 + $0x1b0] sm:$0xff]
  %v1048 = vld [vmem:[%s2 + $0x1b8] sm:$0xff]
  %v1049 = vld [vmem:[%s2 + $0x1c0] sm:$0xff]
  %v1050 = vld [vmem:[%s2 + $0x1c8] sm:$0xff]
  %v1051 = vld [vmem:[%s2 + $0x1d0] sm:$0xff]
  %v1052 = vld [vmem:[%s2 + $0x1d8] sm:$0xff]
  %v1053 = vld [vmem:[%s2 + $0x1e0] sm:$0xff]
  %v1054 = vld [vmem:[%s2 + $0x1e8] sm:$0xff]
  %v1055 = vld [vmem:[%s2 + $0x1f0] sm:$0xff]
  %v1056 = vld [vmem:[%s2 + $0x1f8] sm:$0xff]
  %v1058 = vrot.slane %v990, 4
  %1060 = vmatprep.subr.mxu0 %v994
  %1061 = vmatpush1.msra.mxu0 %v993
  %1062 = vmatprep.subr.mxu0 %v998
  %1063 = vmatpush1.msra.mxu0 %v997
  %1064 = vmatprep.subr.mxu0 %v1002
  %1065 = vmatpush1.msra.mxu0 %v1001
  %1066 = vmatprep.subr.mxu0 %v1006
  %1067 = vmatpush1.msra.mxu0 %v1005
  %1068 = vmatprep.subr.mxu0 %v1010
  %1069 = vmatpush1.msra.mxu0 %v1009
  %1070 = vmatprep.subr.mxu0 %v1014
  %1071 = vmatpush1.msra.mxu0 %v1013
  %1072 = vmatprep.subr.mxu0 %v1018
  %1073 = vmatpush1.msra.mxu0 %v1017
  %1074 = vmatprep.subr.mxu0 %v1022
  %1075 = vmatpush1.msra.mxu0 %v1021
  %1076 = vmatprep.subr.mxu0 %v1026
  %1077 = vmatpush1.msra.mxu0 %v1025
  %1078 = vmatprep.subr.mxu0 %v1030
  %1079 = vmatpush1.msra.mxu0 %v1029
  %1080 = vmatprep.subr.mxu0 %v1034
  %1081 = vmatpush1.msra.mxu0 %v1033
  %1082 = vmatprep.subr.mxu0 %v1038
  %1083 = vmatpush1.msra.mxu0 %v1037
  %1084 = vmatprep.subr.mxu0 %v1042
  %1085 = vmatpush1.msra.mxu0 %v1041
  %1086 = vmatprep.subr.mxu0 %v1046
  %1087 = vmatpush1.msra.mxu0 %v1045
  %1088 = vmatprep.subr.mxu0 %v1050
  %1089 = vmatpush1.msra.mxu0 %v1049
  %1090 = vmatprep.subr.mxu0 %v1054
  %1091 = vmatpush1.msra.mxu0 %v1053
  %1092 = vmatprep.subr.mxu0 0.0
  %1093 = vmatpush1.msra.mxu0 0.0
  %1094 = vmatprep.subr.mxu0 0.0
  %1095 = vmatpush1.msra.mxu0 0.0
  %1096 = vmatprep.subr.mxu0 0.0
  %1097 = vmatpush1.msra.mxu0 0.0
  %1098 = vmatprep.subr.mxu0 0.0
  %1099 = vmatpush1.msra.mxu0 0.0
  %1100 = vmatprep.subr.mxu0 0.0
  %1101 = vmatpush1.msra.mxu0 0.0
  %1102 = vmatprep.subr.mxu0 0.0
  %1103 = vmatpush1.msra.mxu0 0.0
  %1104 = vmatprep.subr.mxu0 0.0
  %1105 = vmatpush1.msra.mxu0 0.0
  %1106 = vmatprep.subr.mxu0 0.0
  %1107 = vmatpush1.msra.mxu0 0.0
  %1108 = vmatprep.subr.mxu0 0.0
  %1109 = vmatpush1.msra.mxu0 0.0
  %1110 = vmatprep.subr.mxu0 0.0
  %1111 = vmatpush1.msra.mxu0 0.0
  %1112 = vmatprep.subr.mxu0 0.0
  %1113 = vmatpush1.msra.mxu0 0.0
  %1114 = vmatprep.subr.mxu0 0.0
  %1115 = vmatpush1.msra.mxu0 0.0
  %1116 = vmatprep.subr.mxu0 0.0
  %1117 = vmatpush1.msra.mxu0 0.0
  %1118 = vmatprep.subr.mxu0 0.0
  %1119 = vmatpush1.msra.mxu0 0.0
  %1120 = vmatprep.subr.mxu0 0.0
  %1121 = vmatpush1.msra.mxu0 0.0
  %1122 = vmatprep.subr.mxu0 0.0
  %1123 = vmatpush1.msra.mxu0 0.0
  %1124 = vmatprep.mubr.f32.mxu0 0.0
  %1125 = vmatmul.mubr.f32.gmra.mrb[0].mxu0 %v1058
  %v1126 = vpop.f32.mrb[0].mxu0
  %v1127 = vadd.f32 0.0, %v1126
  %v1128 = vpop.f32.mrb[0].mxu0
  %v1129 = vadd.f32 0.0, %v1128
  %1130 = vdwg.mxu0
  %1131 = vmatprep.subr.mxu0 %v996
  %1132 = vmatpush1.msra.mxu0 %v995
  %1133 = vmatprep.subr.mxu0 %v1000
  %1134 = vmatpush1.msra.mxu0 %v999
  %1135 = vmatprep.subr.mxu0 %v1004
  %1136 = vmatpush1.msra.mxu0 %v1003
  %1137 = vmatprep.subr.mxu0 %v1008
  %1138 = vmatpush1.msra.mxu0 %v1007
  %1139 = vmatprep.subr.mxu0 %v1012
  %1140 = vmatpush1.msra.mxu0 %v1011
  %1141 = vmatprep.subr.mxu0 %v1016
  %1142 = vmatpush1.msra.mxu0 %v1015
  %1143 = vmatprep.subr.mxu0 %v1020
  %1144 = vmatpush1.msra.mxu0 %v1019
  %1145 = vmatprep.subr.mxu0 %v1024
  %1146 = vmatpush1.msra.mxu0 %v1023
  %1147 = vmatprep.subr.mxu0 %v1028
  %1148 = vmatpush1.msra.mxu0 %v1027
  %1149 = vmatprep.subr.mxu0 %v1032
  %1150 = vmatpush1.msra.mxu0 %v1031
  %1151 = vmatprep.subr.mxu0 %v1036
  %1152 = vmatpush1.msra.mxu0 %v1035
  %1153 = vmatprep.subr.mxu0 %v1040
  %1154 = vmatpush1.msra.mxu0 %v1039
  %1155 = vmatprep.subr.mxu0 %v1044
  %1156 = vmatpush1.msra.mxu0 %v1043
  %1157 = vmatprep.subr.mxu0 %v1048
  %1158 = vmatpush1.msra.mxu0 %v1047
  %1159 = vmatprep.subr.mxu0 %v1052
  %1160 = vmatpush1.msra.mxu0 %v1051
  %1161 = vmatprep.subr.mxu0 %v1056
  %1162 = vmatpush1.msra.mxu0 %v1055
  %1163 = vmatprep.subr.mxu0 0.0
  %1164 = vmatpush1.msra.mxu0 0.0
  %1165 = vmatprep.subr.mxu0 0.0
  %1166 = vmatpush1.msra.mxu0 0.0
  %1167 = vmatprep.subr.mxu0 0.0
  %1168 = vmatpush1.msra.mxu0 0.0
  %1169 = vmatprep.subr.mxu0 0.0
  %1170 = vmatpush1.msra.mxu0 0.0
  %1171 = vmatprep.subr.mxu0 0.0
  %1172 = vmatpush1.msra.mxu0 0.0
  %1173 = vmatprep.subr.mxu0 0.0
  %1174 = vmatpush1.msra.mxu0 0.0
  %1175 = vmatprep.subr.mxu0 0.0
  %1176 = vmatpush1.msra.mxu0 0.0
  %1177 = vmatprep.subr.mxu0 0.0
  %1178 = vmatpush1.msra.mxu0 0.0
  %1179 = vmatprep.subr.mxu0 0.0
  %1180 = vmatpush1.msra.mxu0 0.0
  %1181 = vmatprep.subr.mxu0 0.0
  %1182 = vmatpush1.msra.mxu0 0.0
  %1183 = vmatprep.subr.mxu0 0.0
  %1184 = vmatpush1.msra.mxu0 0.0
  %1185 = vmatprep.subr.mxu0 0.0
  %1186 = vmatpush1.msra.mxu0 0.0
  %1187 = vmatprep.subr.mxu0 0.0
  %1188 = vmatpush1.msra.mxu0 0.0
  %1189 = vmatprep.subr.mxu0 0.0
  %1190 = vmatpush1.msra.mxu0 0.0
  %1191 = vmatprep.subr.mxu0 0.0
  %1192 = vmatpush1.msra.mxu0 0.0
  %1193 = vmatprep.subr.mxu0 0.0
  %1194 = vmatpush1.msra.mxu0 0.0
  %1195 = vmatprep.mubr.f32.mxu0 0.0
  %1196 = vmatmul.mubr.f32.gmra.mrb[0].mxu0 %v1058
  %v1197 = vpop.f32.mrb[0].mxu0
  %v1198 = vadd.f32 0.0, %v1197
  %v1199 = vpop.f32.mrb[0].mxu0
  %v1200 = vadd.f32 0.0, %v1199
  %1201 = vdwg.mxu0
  %v1206 = vrot.slane %v1127, 2
  %v1207 = vrot.slane %v1129, 2
  %v1208 = vrot.slane %v1198, 2
  %v1209 = vrot.slane %v1200, 2
  %v1214 = vadd.f32 %v182, %v1206
  %v1215 = vadd.f32 %v184, %v1207
  %v1216 = vadd.f32 %v259, %v1208
  %v1217 = vadd.f32 %v261, %v1209
  %v1218 = vmul.f32 %v1214, 0.5
  %v1219 = vtanh.pop %v1218
  %v1220 = vmul.f32 %v1219, 0.5
  %v1221 = vadd.f32 %v1220, 0.5
  %v1222 = vmul.f32 %v1215, 0.5
  %v1223 = vtanh.pop %v1222
  %v1224 = vmul.f32 %v1223, 0.5
  %v1225 = vadd.f32 %v1224, 0.5
  %v1226 = vtanh.pop %v1216
  %v1227 = vmul.f32 %v1217, 0.5
  %v1228 = vtanh.pop %v1227
  %v1229 = vmul.f32 %v1228, 0.5
  %v1230 = vadd.f32 %v1229, 0.5
  %v1232 = vrot.slane %v988, 6
  %v1234 = vmul.f32 %v1225, %v1232
  %v1235 = vmul.f32 %v1221, %v1226
  %v1236 = vadd.f32 %v1234, %v1235
  %v1237 = vtanh.pop %v1236
  %v1238 = vmul.f32 %v1230, %v1237
  %s1239 = scalar_lea.vmem %s4, 6
  %1240 = vst [vmem:[%s1239 - $0x6] sm:$0xc0] %v1238
  %v1241 = vld [vmem:[%s2] sm:$0xff]
  %v1242 = vld [vmem:[%s2 + $0x8] sm:$0xff]
  %v1243 = vld [vmem:[%s2 + $0x10] sm:$0xff]
  %v1244 = vld [vmem:[%s2 + $0x18] sm:$0xff]
  %v1245 = vld [vmem:[%s2 + $0x20] sm:$0xff]
  %v1246 = vld [vmem:[%s2 + $0x28] sm:$0xff]
  %v1247 = vld [vmem:[%s2 + $0x30] sm:$0xff]
  %v1248 = vld [vmem:[%s2 + $0x38] sm:$0xff]
  %v1249 = vld [vmem:[%s2 + $0x40] sm:$0xff]
  %v1250 = vld [vmem:[%s2 + $0x48] sm:$0xff]
  %v1251 = vld [vmem:[%s2 + $0x50] sm:$0xff]
  %v1252 = vld [vmem:[%s2 + $0x58] sm:$0xff]
  %v1253 = vld [vmem:[%s2 + $0x60] sm:$0xff]
  %v1254 = vld [vmem:[%s2 + $0x68] sm:$0xff]
  %v1255 = vld [vmem:[%s2 + $0x70] sm:$0xff]
  %v1256 = vld [vmem:[%s2 + $0x78] sm:$0xff]
  %v1257 = vld [vmem:[%s2 + $0x80] sm:$0xff]
  %v1258 = vld [vmem:[%s2 + $0x88] sm:$0xff]
  %v1259 = vld [vmem:[%s2 + $0x90] sm:$0xff]
  %v1260 = vld [vmem:[%s2 + $0x98] sm:$0xff]
  %v1261 = vld [vmem:[%s2 + $0xa0] sm:$0xff]
  %v1262 = vld [vmem:[%s2 + $0xa8] sm:$0xff]
  %v1263 = vld [vmem:[%s2 + $0xb0] sm:$0xff]
  %v1264 = vld [vmem:[%s2 + $0xb8] sm:$0xff]
  %v1265 = vld [vmem:[%s2 + $0xc0] sm:$0xff]
  %v1266 = vld [vmem:[%s2 + $0xc8] sm:$0xff]
  %v1267 = vld [vmem:[%s2 + $0xd0] sm:$0xff]
  %v1268 = vld [vmem:[%s2 + $0xd8] sm:$0xff]
  %v1269 = vld [vmem:[%s2 + $0xe0] sm:$0xff]
  %v1270 = vld [vmem:[%s2 + $0xe8] sm:$0xff]
  %v1271 = vld [vmem:[%s2 + $0xf0] sm:$0xff]
  %v1272 = vld [vmem:[%s2 + $0xf8] sm:$0xff]
  %v1273 = vld [vmem:[%s2 + $0x100] sm:$0xff]
  %v1274 = vld [vmem:[%s2 + $0x108] sm:$0xff]
  %v1275 = vld [vmem:[%s2 + $0x110] sm:$0xff]
  %v1276 = vld [vmem:[%s2 + $0x118] sm:$0xff]
  %v1277 = vld [vmem:[%s2 + $0x120] sm:$0xff]
  %v1278 = vld [vmem:[%s2 + $0x128] sm:$0xff]
  %v1279 = vld [vmem:[%s2 + $0x130] sm:$0xff]
  %v1280 = vld [vmem:[%s2 + $0x138] sm:$0xff]
  %v1281 = vld [vmem:[%s2 + $0x140] sm:$0xff]
  %v1282 = vld [vmem:[%s2 + $0x148] sm:$0xff]
  %v1283 = vld [vmem:[%s2 + $0x150] sm:$0xff]
  %v1284 = vld [vmem:[%s2 + $0x158] sm:$0xff]
  %v1285 = vld [vmem:[%s2 + $0x160] sm:$0xff]
  %v1286 = vld [vmem:[%s2 + $0x168] sm:$0xff]
  %v1287 = vld [vmem:[%s2 + $0x170] sm:$0xff]
  %v1288 = vld [vmem:[%s2 + $0x178] sm:$0xff]
  %v1289 = vld [vmem:[%s2 + $0x180] sm:$0xff]
  %v1290 = vld [vmem:[%s2 + $0x188] sm:$0xff]
  %v1291 = vld [vmem:[%s2 + $0x190] sm:$0xff]
  %v1292 = vld [vmem:[%s2 + $0x198] sm:$0xff]
  %v1293 = vld [vmem:[%s2 + $0x1a0] sm:$0xff]
  %v1294 = vld [vmem:[%s2 + $0x1a8] sm:$0xff]
  %v1295 = vld [vmem:[%s2 + $0x1b0] sm:$0xff]
  %v1296 = vld [vmem:[%s2 + $0x1b8] sm:$0xff]
  %v1297 = vld [vmem:[%s2 + $0x1c0] sm:$0xff]
  %v1298 = vld [vmem:[%s2 + $0x1c8] sm:$0xff]
  %v1299 = vld [vmem:[%s2 + $0x1d0] sm:$0xff]
  %v1300 = vld [vmem:[%s2 + $0x1d8] sm:$0xff]
  %v1301 = vld [vmem:[%s2 + $0x1e0] sm:$0xff]
  %v1302 = vld [vmem:[%s2 + $0x1e8] sm:$0xff]
  %v1303 = vld [vmem:[%s2 + $0x1f0] sm:$0xff]
  %v1304 = vld [vmem:[%s2 + $0x1f8] sm:$0xff]
  %v1306 = vrot.slane %v1238, 6
  %1308 = vmatprep.subr.mxu0 %v1242
  %1309 = vmatpush1.msra.mxu0 %v1241
  %1310 = vmatprep.subr.mxu0 %v1246
  %1311 = vmatpush1.msra.mxu0 %v1245
  %1312 = vmatprep.subr.mxu0 %v1250
  %1313 = vmatpush1.msra.mxu0 %v1249
  %1314 = vmatprep.subr.mxu0 %v1254
  %1315 = vmatpush1.msra.mxu0 %v1253
  %1316 = vmatprep.subr.mxu0 %v1258
  %1317 = vmatpush1.msra.mxu0 %v1257
  %1318 = vmatprep.subr.mxu0 %v1262
  %1319 = vmatpush1.msra.mxu0 %v1261
  %1320 = vmatprep.subr.mxu0 %v1266
  %1321 = vmatpush1.msra.mxu0 %v1265
  %1322 = vmatprep.subr.mxu0 %v1270
  %1323 = vmatpush1.msra.mxu0 %v1269
  %1324 = vmatprep.subr.mxu0 %v1274
  %1325 = vmatpush1.msra.mxu0 %v1273
  %1326 = vmatprep.subr.mxu0 %v1278
  %1327 = vmatpush1.msra.mxu0 %v1277
  %1328 = vmatprep.subr.mxu0 %v1282
  %1329 = vmatpush1.msra.mxu0 %v1281
  %1330 = vmatprep.subr.mxu0 %v1286
  %1331 = vmatpush1.msra.mxu0 %v1285
  %1332 = vmatprep.subr.mxu0 %v1290
  %1333 = vmatpush1.msra.mxu0 %v1289
  %1334 = vmatprep.subr.mxu0 %v1294
  %1335 = vmatpush1.msra.mxu0 %v1293
  %1336 = vmatprep.subr.mxu0 %v1298
  %1337 = vmatpush1.msra.mxu0 %v1297
  %1338 = vmatprep.subr.mxu0 %v1302
  %1339 = vmatpush1.msra.mxu0 %v1301
  %1340 = vmatprep.subr.mxu0 0.0
  %1341 = vmatpush1.msra.mxu0 0.0
  %1342 = vmatprep.subr.mxu0 0.0
  %1343 = vmatpush1.msra.mxu0 0.0
  %1344 = vmatprep.subr.mxu0 0.0
  %1345 = vmatpush1.msra.mxu0 0.0
  %1346 = vmatprep.subr.mxu0 0.0
  %1347 = vmatpush1.msra.mxu0 0.0
  %1348 = vmatprep.subr.mxu0 0.0
  %1349 = vmatpush1.msra.mxu0 0.0
  %1350 = vmatprep.subr.mxu0 0.0
  %1351 = vmatpush1.msra.mxu0 0.0
  %1352 = vmatprep.subr.mxu0 0.0
  %1353 = vmatpush1.msra.mxu0 0.0
  %1354 = vmatprep.subr.mxu0 0.0
  %1355 = vmatpush1.msra.mxu0 0.0
  %1356 = vmatprep.subr.mxu0 0.0
  %1357 = vmatpush1.msra.mxu0 0.0
  %1358 = vmatprep.subr.mxu0 0.0
  %1359 = vmatpush1.msra.mxu0 0.0
  %1360 = vmatprep.subr.mxu0 0.0
  %1361 = vmatpush1.msra.mxu0 0.0
  %1362 = vmatprep.subr.mxu0 0.0
  %1363 = vmatpush1.msra.mxu0 0.0
  %1364 = vmatprep.subr.mxu0 0.0
  %1365 = vmatpush1.msra.mxu0 0.0
  %1366 = vmatprep.subr.mxu0 0.0
  %1367 = vmatpush1.msra.mxu0 0.0
  %1368 = vmatprep.subr.mxu0 0.0
  %1369 = vmatpush1.msra.mxu0 0.0
  %1370 = vmatprep.subr.mxu0 0.0
  %1371 = vmatpush1.msra.mxu0 0.0
  %1372 = vmatprep.mubr.f32.mxu0 0.0
  %1373 = vmatmul.mubr.f32.gmra.mrb[0].mxu0 %v1306
  %v1374 = vpop.f32.mrb[0].mxu0
  %v1375 = vadd.f32 0.0, %v1374
  %v1376 = vpop.f32.mrb[0].mxu0
  %v1377 = vadd.f32 0.0, %v1376
  %1378 = vdwg.mxu0
  %1379 = vmatprep.subr.mxu0 %v1244
  %1380 = vmatpush1.msra.mxu0 %v1243
  %1381 = vmatprep.subr.mxu0 %v1248
  %1382 = vmatpush1.msra.mxu0 %v1247
  %1383 = vmatprep.subr.mxu0 %v1252
  %1384 = vmatpush1.msra.mxu0 %v1251
  %1385 = vmatprep.subr.mxu0 %v1256
  %1386 = vmatpush1.msra.mxu0 %v1255
  %1387 = vmatprep.subr.mxu0 %v1260
  %1388 = vmatpush1.msra.mxu0 %v1259
  %1389 = vmatprep.subr.mxu0 %v1264
  %1390 = vmatpush1.msra.mxu0 %v1263
  %1391 = vmatprep.subr.mxu0 %v1268
  %1392 = vmatpush1.msra.mxu0 %v1267
  %1393 = vmatprep.subr.mxu0 %v1272
  %1394 = vmatpush1.msra.mxu0 %v1271
  %1395 = vmatprep.subr.mxu0 %v1276
  %1396 = vmatpush1.msra.mxu0 %v1275
  %1397 = vmatprep.subr.mxu0 %v1280
  %1398 = vmatpush1.msra.mxu0 %v1279
  %1399 = vmatprep.subr.mxu0 %v1284
  %1400 = vmatpush1.msra.mxu0 %v1283
  %1401 = vmatprep.subr.mxu0 %v1288
  %1402 = vmatpush1.msra.mxu0 %v1287
  %1403 = vmatprep.subr.mxu0 %v1292
  %1404 = vmatpush1.msra.mxu0 %v1291
  %1405 = vmatprep.subr.mxu0 %v1296
  %1406 = vmatpush1.msra.mxu0 %v1295
  %1407 = vmatprep.subr.mxu0 %v1300
  %1408 = vmatpush1.msra.mxu0 %v1299
  %1409 = vmatprep.subr.mxu0 %v1304
  %1410 = vmatpush1.msra.mxu0 %v1303
  %1411 = vmatprep.subr.mxu0 0.0
  %1412 = vmatpush1.msra.mxu0 0.0
  %1413 = vmatprep.subr.mxu0 0.0
  %1414 = vmatpush1.msra.mxu0 0.0
  %1415 = vmatprep.subr.mxu0 0.0
  %1416 = vmatpush1.msra.mxu0 0.0
  %1417 = vmatprep.subr.mxu0 0.0
  %1418 = vmatpush1.msra.mxu0 0.0
  %1419 = vmatprep.subr.mxu0 0.0
  %1420 = vmatpush1.msra.mxu0 0.0
  %1421 = vmatprep.subr.mxu0 0.0
  %1422 = vmatpush1.msra.mxu0 0.0
  %1423 = vmatprep.subr.mxu0 0.0
  %1424 = vmatpush1.msra.mxu0 0.0
  %1425 = vmatprep.subr.mxu0 0.0
  %1426 = vmatpush1.msra.mxu0 0.0
  %1427 = vmatprep.subr.mxu0 0.0
  %1428 = vmatpush1.msra.mxu0 0.0
  %1429 = vmatprep.subr.mxu0 0.0
  %1430 = vmatpush1.msra.mxu0 0.0
  %1431 = vmatprep.subr.mxu0 0.0
  %1432 = vmatpush1.msra.mxu0 0.0
  %1433 = vmatprep.subr.mxu0 0.0
  %1434 = vmatpush1.msra.mxu0 0.0
  %1435 = vmatprep.subr.mxu0 0.0
  %1436 = vmatpush1.msra.mxu0 0.0
  %1437 = vmatprep.subr.mxu0 0.0
  %1438 = vmatpush1.msra.mxu0 0.0
  %1439 = vmatprep.subr.mxu0 0.0
  %1440 = vmatpush1.msra.mxu0 0.0
  %1441 = vmatprep.subr.mxu0 0.0
  %1442 = vmatpush1.msra.mxu0 0.0
  %1443 = vmatprep.mubr.f32.mxu0 0.0
  %1444 = vmatmul.mubr.f32.gmra.mrb[0].mxu0 %v1306
  %v1445 = vpop.f32.mrb[0].mxu0
  %v1446 = vadd.f32 0.0, %v1445
  %v1447 = vpop.f32.mrb[0].mxu0
  %v1448 = vadd.f32 0.0, %v1447
  %1449 = vdwg.mxu0
  %v1450 = vadd.f32 %v188, %v1375
  %v1451 = vadd.f32 %v190, %v1377
  %v1452 = vadd.f32 %v265, %v1446
  %v1453 = vadd.f32 %v267, %v1448
  %v1454 = vmul.f32 %v1450, 0.5
  %v1455 = vtanh.pop %v1454
  %v1456 = vmul.f32 %v1455, 0.5
  %v1457 = vadd.f32 %v1456, 0.5
  %v1458 = vmul.f32 %v1451, 0.5
  %v1459 = vtanh.pop %v1458
  %v1460 = vmul.f32 %v1459, 0.5
  %v1461 = vadd.f32 %v1460, 0.5
  %v1462 = vtanh.pop %v1452
  %v1463 = vmul.f32 %v1453, 0.5
  %v1464 = vtanh.pop %v1463
  %v1465 = vmul.f32 %v1464, 0.5
  %v1466 = vadd.f32 %v1465, 0.5
  %v1468 = vrot.slane %v1236, 6
  %v1470 = vmul.f32 %v1461, %v1468
  %v1471 = vmul.f32 %v1457, %v1462
  %v1472 = vadd.f32 %v1470, %v1471
  %v1473 = vtanh.pop %v1472
  %v1474 = vmul.f32 %v1466, %v1473
  %s1475 = scalar_lea.vmem %s4, 8
  %1476 = vst [vmem:[%s1475] sm:$0x3] %v1474
  %v1477 = vld [vmem:[%s2] sm:$0xff]
  %v1478 = vld [vmem:[%s2 + $0x8] sm:$0xff]
  %v1479 = vld [vmem:[%s2 + $0x10] sm:$0xff]
  %v1480 = vld [vmem:[%s2 + $0x18] sm:$0xff]
  %v1481 = vld [vmem:[%s2 + $0x20] sm:$0xff]
  %v1482 = vld [vmem:[%s2 + $0x28] sm:$0xff]
  %v1483 = vld [vmem:[%s2 + $0x30] sm:$0xff]
  %v1484 = vld [vmem:[%s2 + $0x38] sm:$0xff]
  %v1485 = vld [vmem:[%s2 + $0x40] sm:$0xff]
  %v1486 = vld [vmem:[%s2 + $0x48] sm:$0xff]
  %v1487 = vld [vmem:[%s2 + $0x50] sm:$0xff]
  %v1488 = vld [vmem:[%s2 + $0x58] sm:$0xff]
  %v1489 = vld [vmem:[%s2 + $0x60] sm:$0xff]
  %v1490 = vld [vmem:[%s2 + $0x68] sm:$0xff]
  %v1491 = vld [vmem:[%s2 + $0x70] sm:$0xff]
  %v1492 = vld [vmem:[%s2 + $0x78] sm:$0xff]
  %v1493 = vld [vmem:[%s2 + $0x80] sm:$0xff]
  %v1494 = vld [vmem:[%s2 + $0x88] sm:$0xff]
  %v1495 = vld [vmem:[%s2 + $0x90] sm:$0xff]
  %v1496 = vld [vmem:[%s2 + $0x98] sm:$0xff]
  %v1497 = vld [vmem:[%s2 + $0xa0] sm:$0xff]
  %v1498 = vld [vmem:[%s2 + $0xa8] sm:$0xff]
  %v1499 = vld [vmem:[%s2 + $0xb0] sm:$0xff]
  %v1500 = vld [vmem:[%s2 + $0xb8] sm:$0xff]
  %v1501 = vld [vmem:[%s2 + $0xc0] sm:$0xff]
  %v1502 = vld [vmem:[%s2 + $0xc8] sm:$0xff]
  %v1503 = vld [vmem:[%s2 + $0xd0] sm:$0xff]
  %v1504 = vld [vmem:[%s2 + $0xd8] sm:$0xff]
  %v1505 = vld [vmem:[%s2 + $0xe0] sm:$0xff]
  %v1506 = vld [vmem:[%s2 + $0xe8] sm:$0xff]
  %v1507 = vld [vmem:[%s2 + $0xf0] sm:$0xff]
  %v1508 = vld [vmem:[%s2 + $0xf8] sm:$0xff]
  %v1509 = vld [vmem:[%s2 + $0x100] sm:$0xff]
  %v1510 = vld [vmem:[%s2 + $0x108] sm:$0xff]
  %v1511 = vld [vmem:[%s2 + $0x110] sm:$0xff]
  %v1512 = vld [vmem:[%s2 + $0x118] sm:$0xff]
  %v1513 = vld [vmem:[%s2 + $0x120] sm:$0xff]
  %v1514 = vld [vmem:[%s2 + $0x128] sm:$0xff]
  %v1515 = vld [vmem:[%s2 + $0x130] sm:$0xff]
  %v1516 = vld [vmem:[%s2 + $0x138] sm:$0xff]
  %v1517 = vld [vmem:[%s2 + $0x140] sm:$0xff]
  %v1518 = vld [vmem:[%s2 + $0x148] sm:$0xff]
  %v1519 = vld [vmem:[%s2 + $0x150] sm:$0xff]
  %v1520 = vld [vmem:[%s2 + $0x158] sm:$0xff]
  %v1521 = vld [vmem:[%s2 + $0x160] sm:$0xff]
  %v1522 = vld [vmem:[%s2 + $0x168] sm:$0xff]
  %v1523 = vld [vmem:[%s2 + $0x170] sm:$0xff]
  %v1524 = vld [vmem:[%s2 + $0x178] sm:$0xff]
  %v1525 = vld [vmem:[%s2 + $0x180] sm:$0xff]
  %v1526 = vld [vmem:[%s2 + $0x188] sm:$0xff]
  %v1527 = vld [vmem:[%s2 + $0x190] sm:$0xff]
  %v1528 = vld [vmem:[%s2 + $0x198] sm:$0xff]
  %v1529 = vld [vmem:[%s2 + $0x1a0] sm:$0xff]
  %v1530 = vld [vmem:[%s2 + $0x1a8] sm:$0xff]
  %v1531 = vld [vmem:[%s2 + $0x1b0] sm:$0xff]
  %v1532 = vld [vmem:[%s2 + $0x1b8] sm:$0xff]
  %v1533 = vld [vmem:[%s2 + $0x1c0] sm:$0xff]
  %v1534 = vld [vmem:[%s2 + $0x1c8] sm:$0xff]
  %v1535 = vld [vmem:[%s2 + $0x1d0] sm:$0xff]
  %v1536 = vld [vmem:[%s2 + $0x1d8] sm:$0xff]
  %v1537 = vld [vmem:[%s2 + $0x1e0] sm:$0xff]
  %v1538 = vld [vmem:[%s2 + $0x1e8] sm:$0xff]
  %v1539 = vld [vmem:[%s2 + $0x1f0] sm:$0xff]
  %v1540 = vld [vmem:[%s2 + $0x1f8] sm:$0xff]
  %1541 = vmatprep.subr.mxu0 %v1478
  %1542 = vmatpush1.msra.mxu0 %v1477
  %1543 = vmatprep.subr.mxu0 %v1482
  %1544 = vmatpush1.msra.mxu0 %v1481
  %1545 = vmatprep.subr.mxu0 %v1486
  %1546 = vmatpush1.msra.mxu0 %v1485
  %1547 = vmatprep.subr.mxu0 %v1490
  %1548 = vmatpush1.msra.mxu0 %v1489
  %1549 = vmatprep.subr.mxu0 %v1494
  %1550 = vmatpush1.msra.mxu0 %v1493
  %1551 = vmatprep.subr.mxu0 %v1498
  %1552 = vmatpush1.msra.mxu0 %v1497
  %1553 = vmatprep.subr.mxu0 %v1502
  %1554 = vmatpush1.msra.mxu0 %v1501
  %1555 = vmatprep.subr.mxu0 %v1506
  %1556 = vmatpush1.msra.mxu0 %v1505
  %1557 = vmatprep.subr.mxu0 %v1510
  %1558 = vmatpush1.msra.mxu0 %v1509
  %1559 = vmatprep.subr.mxu0 %v1514
  %1560 = vmatpush1.msra.mxu0 %v1513
  %1561 = vmatprep.subr.mxu0 %v1518
  %1562 = vmatpush1.msra.mxu0 %v1517
  %1563 = vmatprep.subr.mxu0 %v1522
  %1564 = vmatpush1.msra.mxu0 %v1521
  %1565 = vmatprep.subr.mxu0 %v1526
  %1566 = vmatpush1.msra.mxu0 %v1525
  %1567 = vmatprep.subr.mxu0 %v1530
  %1568 = vmatpush1.msra.mxu0 %v1529
  %1569 = vmatprep.subr.mxu0 %v1534
  %1570 = vmatpush1.msra.mxu0 %v1533
  %1571 = vmatprep.subr.mxu0 %v1538
  %1572 = vmatpush1.msra.mxu0 %v1537
  %1573 = vmatprep.subr.mxu0 0.0
  %1574 = vmatpush1.msra.mxu0 0.0
  %1575 = vmatprep.subr.mxu0 0.0
  %1576 = vmatpush1.msra.mxu0 0.0
  %1577 = vmatprep.subr.mxu0 0.0
  %1578 = vmatpush1.msra.mxu0 0.0
  %1579 = vmatprep.subr.mxu0 0.0
  %1580 = vmatpush1.msra.mxu0 0.0
  %1581 = vmatprep.subr.mxu0 0.0
  %1582 = vmatpush1.msra.mxu0 0.0
  %1583 = vmatprep.subr.mxu0 0.0
  %1584 = vmatpush1.msra.mxu0 0.0
  %1585 = vmatprep.subr.mxu0 0.0
  %1586 = vmatpush1.msra.mxu0 0.0
  %1587 = vmatprep.subr.mxu0 0.0
  %1588 = vmatpush1.msra.mxu0 0.0
  %1589 = vmatprep.subr.mxu0 0.0
  %1590 = vmatpush1.msra.mxu0 0.0
  %1591 = vmatprep.subr.mxu0 0.0
  %1592 = vmatpush1.msra.mxu0 0.0
  %1593 = vmatprep.subr.mxu0 0.0
  %1594 = vmatpush1.msra.mxu0 0.0
  %1595 = vmatprep.subr.mxu0 0.0
  %1596 = vmatpush1.msra.mxu0 0.0
  %1597 = vmatprep.subr.mxu0 0.0
  %1598 = vmatpush1.msra.mxu0 0.0
  %1599 = vmatprep.subr.mxu0 0.0
  %1600 = vmatpush1.msra.mxu0 0.0
  %1601 = vmatprep.subr.mxu0 0.0
  %1602 = vmatpush1.msra.mxu0 0.0
  %1603 = vmatprep.subr.mxu0 0.0
  %1604 = vmatpush1.msra.mxu0 0.0
  %1605 = vmatprep.mubr.f32.mxu0 0.0
  %1606 = vmatmul.mubr.f32.gmra.mrb[0].mxu0 %v1474
  %v1607 = vpop.f32.mrb[0].mxu0
  %v1608 = vadd.f32 0.0, %v1607
  %v1609 = vpop.f32.mrb[0].mxu0
  %v1610 = vadd.f32 0.0, %v1609
  %1611 = vdwg.mxu0
  %1612 = vmatprep.subr.mxu0 %v1480
  %1613 = vmatpush1.msra.mxu0 %v1479
  %1614 = vmatprep.subr.mxu0 %v1484
  %1615 = vmatpush1.msra.mxu0 %v1483
  %1616 = vmatprep.subr.mxu0 %v1488
  %1617 = vmatpush1.msra.mxu0 %v1487
  %1618 = vmatprep.subr.mxu0 %v1492
  %1619 = vmatpush1.msra.mxu0 %v1491
  %1620 = vmatprep.subr.mxu0 %v1496
  %1621 = vmatpush1.msra.mxu0 %v1495
  %1622 = vmatprep.subr.mxu0 %v1500
  %1623 = vmatpush1.msra.mxu0 %v1499
  %1624 = vmatprep.subr.mxu0 %v1504
  %1625 = vmatpush1.msra.mxu0 %v1503
  %1626 = vmatprep.subr.mxu0 %v1508
  %1627 = vmatpush1.msra.mxu0 %v1507
  %1628 = vmatprep.subr.mxu0 %v1512
  %1629 = vmatpush1.msra.mxu0 %v1511
  %1630 = vmatprep.subr.mxu0 %v1516
  %1631 = vmatpush1.msra.mxu0 %v1515
  %1632 = vmatprep.subr.mxu0 %v1520
  %1633 = vmatpush1.msra.mxu0 %v1519
  %1634 = vmatprep.subr.mxu0 %v1524
  %1635 = vmatpush1.msra.mxu0 %v1523
  %1636 = vmatprep.subr.mxu0 %v1528
  %1637 = vmatpush1.msra.mxu0 %v1527
  %1638 = vmatprep.subr.mxu0 %v1532
  %1639 = vmatpush1.msra.mxu0 %v1531
  %1640 = vmatprep.subr.mxu0 %v1536
  %1641 = vmatpush1.msra.mxu0 %v1535
  %1642 = vmatprep.subr.mxu0 %v1540
  %1643 = vmatpush1.msra.mxu0 %v1539
  %1644 = vmatprep.subr.mxu0 0.0
  %1645 = vmatpush1.msra.mxu0 0.0
  %1646 = vmatprep.subr.mxu0 0.0
  %1647 = vmatpush1.msra.mxu0 0.0
  %1648 = vmatprep.subr.mxu0 0.0
  %1649 = vmatpush1.msra.mxu0 0.0
  %1650 = vmatprep.subr.mxu0 0.0
  %1651 = vmatpush1.msra.mxu0 0.0
  %1652 = vmatprep.subr.mxu0 0.0
  %1653 = vmatpush1.msra.mxu0 0.0
  %1654 = vmatprep.subr.mxu0 0.0
  %1655 = vmatpush1.msra.mxu0 0.0
  %1656 = vmatprep.subr.mxu0 0.0
  %1657 = vmatpush1.msra.mxu0 0.0
  %1658 = vmatprep.subr.mxu0 0.0
  %1659 = vmatpush1.msra.mxu0 0.0
  %1660 = vmatprep.subr.mxu0 0.0
  %1661 = vmatpush1.msra.mxu0 0.0
  %1662 = vmatprep.subr.mxu0 0.0
  %1663 = vmatpush1.msra.mxu0 0.0
  %1664 = vmatprep.subr.mxu0 0.0
  %1665 = vmatpush1.msra.mxu0 0.0
  %1666 = vmatprep.subr.mxu0 0.0
  %1667 = vmatpush1.msra.mxu0 0.0
  %1668 = vmatprep.subr.mxu0 0.0
  %1669 = vmatpush1.msra.mxu0 0.0
  %1670 = vmatprep.subr.mxu0 0.0
  %1671 = vmatpush1.msra.mxu0 0.0
  %1672 = vmatprep.subr.mxu0 0.0
  %1673 = vmatpush1.msra.mxu0 0.0
  %1674 = vmatprep.subr.mxu0 0.0
  %1675 = vmatpush1.msra.mxu0 0.0
  %1676 = vmatprep.mubr.f32.mxu0 0.0
  %1677 = vmatmul.mubr.f32.gmra.mrb[0].mxu0 %v1474
  %v1678 = vpop.f32.mrb[0].mxu0
  %v1679 = vadd.f32 0.0, %v1678
  %v1680 = vpop.f32.mrb[0].mxu0
  %v1681 = vadd.f32 0.0, %v1680
  %1682 = vdwg.mxu0
  %v1687 = vrot.slane %v1608, 6
  %v1688 = vrot.slane %v1610, 6
  %v1689 = vrot.slane %v1679, 6
  %v1690 = vrot.slane %v1681, 6
  %v1695 = vadd.f32 %v188, %v1687
  %v1696 = vadd.f32 %v190, %v1688
  %v1697 = vadd.f32 %v265, %v1689
  %v1698 = vadd.f32 %v267, %v1690
  %v1699 = vmul.f32 %v1695, 0.5
  %v1700 = vtanh.pop %v1699
  %v1701 = vmul.f32 %v1700, 0.5
  %v1702 = vadd.f32 %v1701, 0.5
  %v1703 = vmul.f32 %v1696, 0.5
  %v1704 = vtanh.pop %v1703
  %v1705 = vmul.f32 %v1704, 0.5
  %v1706 = vadd.f32 %v1705, 0.5
  %v1707 = vtanh.pop %v1697
  %v1708 = vmul.f32 %v1698, 0.5
  %v1709 = vtanh.pop %v1708
  %v1710 = vmul.f32 %v1709, 0.5
  %v1711 = vadd.f32 %v1710, 0.5
  %v1713 = vrot.slane %v1472, 6
  %v1715 = vmul.f32 %v1706, %v1713
  %v1716 = vmul.f32 %v1702, %v1707
  %v1717 = vadd.f32 %v1715, %v1716
  %v1718 = vtanh.pop %v1717
  %v1719 = vmul.f32 %v1711, %v1718
  %s1720 = scalar_lea.vmem %s4, 10
  %1721 = vst [vmem:[%s1720 - $0x2] sm:$0xc] %v1719
  %v1722 = vld [vmem:[%s2] sm:$0xff]
  %v1723 = vld [vmem:[%s2 + $0x8] sm:$0xff]
  %v1724 = vld [vmem:[%s2 + $0x10] sm:$0xff]
  %v1725 = vld [vmem:[%s2 + $0x18] sm:$0xff]
  %v1726 = vld [vmem:[%s2 + $0x20] sm:$0xff]
  %v1727 = vld [vmem:[%s2 + $0x28] sm:$0xff]
  %v1728 = vld [vmem:[%s2 + $0x30] sm:$0xff]
  %v1729 = vld [vmem:[%s2 + $0x38] sm:$0xff]
  %v1730 = vld [vmem:[%s2 + $0x40] sm:$0xff]
  %v1731 = vld [vmem:[%s2 + $0x48] sm:$0xff]
  %v1732 = vld [vmem:[%s2 + $0x50] sm:$0xff]
  %v1733 = vld [vmem:[%s2 + $0x58] sm:$0xff]
  %v1734 = vld [vmem:[%s2 + $0x60] sm:$0xff]
  %v1735 = vld [vmem:[%s2 + $0x68] sm:$0xff]
  %v1736 = vld [vmem:[%s2 + $0x70] sm:$0xff]
  %v1737 = vld [vmem:[%s2 + $0x78] sm:$0xff]
  %v1738 = vld [vmem:[%s2 + $0x80] sm:$0xff]
  %v1739 = vld [vmem:[%s2 + $0x88] sm:$0xff]
  %v1740 = vld [vmem:[%s2 + $0x90] sm:$0xff]
  %v1741 = vld [vmem:[%s2 + $0x98] sm:$0xff]
  %v1742 = vld [vmem:[%s2 + $0xa0] sm:$0xff]
  %v1743 = vld [vmem:[%s2 + $0xa8] sm:$0xff]
  %v1744 = vld [vmem:[%s2 + $0xb0] sm:$0xff]
  %v1745 = vld [vmem:[%s2 + $0xb8] sm:$0xff]
  %v1746 = vld [vmem:[%s2 + $0xc0] sm:$0xff]
  %v1747 = vld [vmem:[%s2 + $0xc8] sm:$0xff]
  %v1748 = vld [vmem:[%s2 + $0xd0] sm:$0xff]
  %v1749 = vld [vmem:[%s2 + $0xd8] sm:$0xff]
  %v1750 = vld [vmem:[%s2 + $0xe0] sm:$0xff]
  %v1751 = vld [vmem:[%s2 + $0xe8] sm:$0xff]
  %v1752 = vld [vmem:[%s2 + $0xf0] sm:$0xff]
  %v1753 = vld [vmem:[%s2 + $0xf8] sm:$0xff]
  %v1754 = vld [vmem:[%s2 + $0x100] sm:$0xff]
  %v1755 = vld [vmem:[%s2 + $0x108] sm:$0xff]
  %v1756 = vld [vmem:[%s2 + $0x110] sm:$0xff]
  %v1757 = vld [vmem:[%s2 + $0x118] sm:$0xff]
  %v1758 = vld [vmem:[%s2 + $0x120] sm:$0xff]
  %v1759 = vld [vmem:[%s2 + $0x128] sm:$0xff]
  %v1760 = vld [vmem:[%s2 + $0x130] sm:$0xff]
  %v1761 = vld [vmem:[%s2 + $0x138] sm:$0xff]
  %v1762 = vld [vmem:[%s2 + $0x140] sm:$0xff]
  %v1763 = vld [vmem:[%s2 + $0x148] sm:$0xff]
  %v1764 = vld [vmem:[%s2 + $0x150] sm:$0xff]
  %v1765 = vld [vmem:[%s2 + $0x158] sm:$0xff]
  %v1766 = vld [vmem:[%s2 + $0x160] sm:$0xff]
  %v1767 = vld [vmem:[%s2 + $0x168] sm:$0xff]
  %v1768 = vld [vmem:[%s2 + $0x170] sm:$0xff]
  %v1769 = vld [vmem:[%s2 + $0x178] sm:$0xff]
  %v1770 = vld [vmem:[%s2 + $0x180] sm:$0xff]
  %v1771 = vld [vmem:[%s2 + $0x188] sm:$0xff]
  %v1772 = vld [vmem:[%s2 + $0x190] sm:$0xff]
  %v1773 = vld [vmem:[%s2 + $0x198] sm:$0xff]
  %v1774 = vld [vmem:[%s2 + $0x1a0] sm:$0xff]
  %v1775 = vld [vmem:[%s2 + $0x1a8] sm:$0xff]
  %v1776 = vld [vmem:[%s2 + $0x1b0] sm:$0xff]
  %v1777 = vld [vmem:[%s2 + $0x1b8] sm:$0xff]
  %v1778 = vld [vmem:[%s2 + $0x1c0] sm:$0xff]
  %v1779 = vld [vmem:[%s2 + $0x1c8] sm:$0xff]
  %v1780 = vld [vmem:[%s2 + $0x1d0] sm:$0xff]
  %v1781 = vld [vmem:[%s2 + $0x1d8] sm:$0xff]
  %v1782 = vld [vmem:[%s2 + $0x1e0] sm:$0xff]
  %v1783 = vld [vmem:[%s2 + $0x1e8] sm:$0xff]
  %v1784 = vld [vmem:[%s2 + $0x1f0] sm:$0xff]
  %v1785 = vld [vmem:[%s2 + $0x1f8] sm:$0xff]
  %v1787 = vrot.slane %v1719, 2
  %1789 = vmatprep.subr.mxu0 %v1723
  %1790 = vmatpush1.msra.mxu0 %v1722
  %1791 = vmatprep.subr.mxu0 %v1727
  %1792 = vmatpush1.msra.mxu0 %v1726
  %1793 = vmatprep.subr.mxu0 %v1731
  %1794 = vmatpush1.msra.mxu0 %v1730
  %1795 = vmatprep.subr.mxu0 %v1735
  %1796 = vmatpush1.msra.mxu0 %v1734
  %1797 = vmatprep.subr.mxu0 %v1739
  %1798 = vmatpush1.msra.mxu0 %v1738
  %1799 = vmatprep.subr.mxu0 %v1743
  %1800 = vmatpush1.msra.mxu0 %v1742
  %1801 = vmatprep.subr.mxu0 %v1747
  %1802 = vmatpush1.msra.mxu0 %v1746
  %1803 = vmatprep.subr.mxu0 %v1751
  %1804 = vmatpush1.msra.mxu0 %v1750
  %1805 = vmatprep.subr.mxu0 %v1755
  %1806 = vmatpush1.msra.mxu0 %v1754
  %1807 = vmatprep.subr.mxu0 %v1759
  %1808 = vmatpush1.msra.mxu0 %v1758
  %1809 = vmatprep.subr.mxu0 %v1763
  %1810 = vmatpush1.msra.mxu0 %v1762
  %1811 = vmatprep.subr.mxu0 %v1767
  %1812 = vmatpush1.msra.mxu0 %v1766
  %1813 = vmatprep.subr.mxu0 %v1771
  %1814 = vmatpush1.msra.mxu0 %v1770
  %1815 = vmatprep.subr.mxu0 %v1775
  %1816 = vmatpush1.msra.mxu0 %v1774
  %1817 = vmatprep.subr.mxu0 %v1779
  %1818 = vmatpush1.msra.mxu0 %v1778
  %1819 = vmatprep.subr.mxu0 %v1783
  %1820 = vmatpush1.msra.mxu0 %v1782
  %1821 = vmatprep.subr.mxu0 0.0
  %1822 = vmatpush1.msra.mxu0 0.0
  %1823 = vmatprep.subr.mxu0 0.0
  %1824 = vmatpush1.msra.mxu0 0.0
  %1825 = vmatprep.subr.mxu0 0.0
  %1826 = vmatpush1.msra.mxu0 0.0
  %1827 = vmatprep.subr.mxu0 0.0
  %1828 = vmatpush1.msra.mxu0 0.0
  %1829 = vmatprep.subr.mxu0 0.0
  %1830 = vmatpush1.msra.mxu0 0.0
  %1831 = vmatprep.subr.mxu0 0.0
  %1832 = vmatpush1.msra.mxu0 0.0
  %1833 = vmatprep.subr.mxu0 0.0
  %1834 = vmatpush1.msra.mxu0 0.0
  %1835 = vmatprep.subr.mxu0 0.0
  %1836 = vmatpush1.msra.mxu0 0.0
  %1837 = vmatprep.subr.mxu0 0.0
  %1838 = vmatpush1.msra.mxu0 0.0
  %1839 = vmatprep.subr.mxu0 0.0
  %1840 = vmatpush1.msra.mxu0 0.0
  %1841 = vmatprep.subr.mxu0 0.0
  %1842 = vmatpush1.msra.mxu0 0.0
  %1843 = vmatprep.subr.mxu0 0.0
  %1844 = vmatpush1.msra.mxu0 0.0
  %1845 = vmatprep.subr.mxu0 0.0
  %1846 = vmatpush1.msra.mxu0 0.0
  %1847 = vmatprep.subr.mxu0 0.0
  %1848 = vmatpush1.msra.mxu0 0.0
  %1849 = vmatprep.subr.mxu0 0.0
  %1850 = vmatpush1.msra.mxu0 0.0
  %1851 = vmatprep.subr.mxu0 0.0
  %1852 = vmatpush1.msra.mxu0 0.0
  %1853 = vmatprep.mubr.f32.mxu0 0.0
  %1854 = vmatmul.mubr.f32.gmra.mrb[0].mxu0 %v1787
  %v1855 = vpop.f32.mrb[0].mxu0
  %v1856 = vadd.f32 0.0, %v1855
  %v1857 = vpop.f32.mrb[0].mxu0
  %v1858 = vadd.f32 0.0, %v1857
  %1859 = vdwg.mxu0
  %1860 = vmatprep.subr.mxu0 %v1725
  %1861 = vmatpush1.msra.mxu0 %v1724
  %1862 = vmatprep.subr.mxu0 %v1729
  %1863 = vmatpush1.msra.mxu0 %v1728
  %1864 = vmatprep.subr.mxu0 %v1733
  %1865 = vmatpush1.msra.mxu0 %v1732
  %1866 = vmatprep.subr.mxu0 %v1737
  %1867 = vmatpush1.msra.mxu0 %v1736
  %1868 = vmatprep.subr.mxu0 %v1741
  %1869 = vmatpush1.msra.mxu0 %v1740
  %1870 = vmatprep.subr.mxu0 %v1745
  %1871 = vmatpush1.msra.mxu0 %v1744
  %1872 = vmatprep.subr.mxu0 %v1749
  %1873 = vmatpush1.msra.mxu0 %v1748
  %1874 = vmatprep.subr.mxu0 %v1753
  %1875 = vmatpush1.msra.mxu0 %v1752
  %1876 = vmatprep.subr.mxu0 %v1757
  %1877 = vmatpush1.msra.mxu0 %v1756
  %1878 = vmatprep.subr.mxu0 %v1761
  %1879 = vmatpush1.msra.mxu0 %v1760
  %1880 = vmatprep.subr.mxu0 %v1765
  %1881 = vmatpush1.msra.mxu0 %v1764
  %1882 = vmatprep.subr.mxu0 %v1769
  %1883 = vmatpush1.msra.mxu0 %v1768
  %1884 = vmatprep.subr.mxu0 %v1773
  %1885 = vmatpush1.msra.mxu0 %v1772
  %1886 = vmatprep.subr.mxu0 %v1777
  %1887 = vmatpush1.msra.mxu0 %v1776
  %1888 = vmatprep.subr.mxu0 %v1781
  %1889 = vmatpush1.msra.mxu0 %v1780
  %1890 = vmatprep.subr.mxu0 %v1785
  %1891 = vmatpush1.msra.mxu0 %v1784
  %1892 = vmatprep.subr.mxu0 0.0
  %1893 = vmatpush1.msra.mxu0 0.0
  %1894 = vmatprep.subr.mxu0 0.0
  %1895 = vmatpush1.msra.mxu0 0.0
  %1896 = vmatprep.subr.mxu0 0.0
  %1897 = vmatpush1.msra.mxu0 0.0
  %1898 = vmatprep.subr.mxu0 0.0
  %1899 = vmatpush1.msra.mxu0 0.0
  %1900 = vmatprep.subr.mxu0 0.0
  %1901 = vmatpush1.msra.mxu0 0.0
  %1902 = vmatprep.subr.mxu0 0.0
  %1903 = vmatpush1.msra.mxu0 0.0
  %1904 = vmatprep.subr.mxu0 0.0
  %1905 = vmatpush1.msra.mxu0 0.0
  %1906 = vmatprep.subr.mxu0 0.0
  %1907 = vmatpush1.msra.mxu0 0.0
  %1908 = vmatprep.subr.mxu0 0.0
  %1909 = vmatpush1.msra.mxu0 0.0
  %1910 = vmatprep.subr.mxu0 0.0
  %1911 = vmatpush1.msra.mxu0 0.0
  %1912 = vmatprep.subr.mxu0 0.0
  %1913 = vmatpush1.msra.mxu0 0.0
  %1914 = vmatprep.subr.mxu0 0.0
  %1915 = vmatpush1.msra.mxu0 0.0
  %1916 = vmatprep.subr.mxu0 0.0
  %1917 = vmatpush1.msra.mxu0 0.0
  %1918 = vmatprep.subr.mxu0 0.0
  %1919 = vmatpush1.msra.mxu0 0.0
  %1920 = vmatprep.subr.mxu0 0.0
  %1921 = vmatpush1.msra.mxu0 0.0
  %1922 = vmatprep.subr.mxu0 0.0
  %1923 = vmatpush1.msra.mxu0 0.0
  %1924 = vmatprep.mubr.f32.mxu0 0.0
  %1925 = vmatmul.mubr.f32.gmra.mrb[0].mxu0 %v1787
  %v1926 = vpop.f32.mrb[0].mxu0
  %v1927 = vadd.f32 0.0, %v1926
  %v1928 = vpop.f32.mrb[0].mxu0
  %v1929 = vadd.f32 0.0, %v1928
  %1930 = vdwg.mxu0
  %v1935 = vrot.slane %v1856, 4
  %v1936 = vrot.slane %v1858, 4
  %v1937 = vrot.slane %v1927, 4
  %v1938 = vrot.slane %v1929, 4
  %v1943 = vadd.f32 %v188, %v1935
  %v1944 = vadd.f32 %v190, %v1936
  %v1945 = vadd.f32 %v265, %v1937
  %v1946 = vadd.f32 %v267, %v1938
  %v1947 = vmul.f32 %v1943, 0.5
  %v1948 = vtanh.pop %v1947
  %v1949 = vmul.f32 %v1948, 0.5
  %v1950 = vadd.f32 %v1949, 0.5
  %v1951 = vmul.f32 %v1944, 0.5
  %v1952 = vtanh.pop %v1951
  %v1953 = vmul.f32 %v1952, 0.5
  %v1954 = vadd.f32 %v1953, 0.5
  %v1955 = vtanh.pop %v1945
  %v1956 = vmul.f32 %v1946, 0.5
  %v1957 = vtanh.pop %v1956
  %v1958 = vmul.f32 %v1957, 0.5
  %v1959 = vadd.f32 %v1958, 0.5
  %v1961 = vrot.slane %v1717, 6
  %v1963 = vmul.f32 %v1954, %v1961
  %v1964 = vmul.f32 %v1950, %v1955
  %v1965 = vadd.f32 %v1963, %v1964
  %v1966 = vtanh.pop %v1965
  %v1967 = vmul.f32 %v1959, %v1966
  %s1968 = scalar_lea.vmem %s4, 12
  %1969 = vst [vmem:[%s1968 - $0x4] sm:$0x30] %v1967
  %v1970 = vld [vmem:[%s2] sm:$0xff]
  %v1971 = vld [vmem:[%s2 + $0x8] sm:$0xff]
  %v1972 = vld [vmem:[%s2 + $0x10] sm:$0xff]
  %v1973 = vld [vmem:[%s2 + $0x18] sm:$0xff]
  %v1974 = vld [vmem:[%s2 + $0x20] sm:$0xff]
  %v1975 = vld [vmem:[%s2 + $0x28] sm:$0xff]
  %v1976 = vld [vmem:[%s2 + $0x30] sm:$0xff]
  %v1977 = vld [vmem:[%s2 + $0x38] sm:$0xff]
  %v1978 = vld [vmem:[%s2 + $0x40] sm:$0xff]
  %v1979 = vld [vmem:[%s2 + $0x48] sm:$0xff]
  %v1980 = vld [vmem:[%s2 + $0x50] sm:$0xff]
  %v1981 = vld [vmem:[%s2 + $0x58] sm:$0xff]
  %v1982 = vld [vmem:[%s2 + $0x60] sm:$0xff]
  %v1983 = vld [vmem:[%s2 + $0x68] sm:$0xff]
  %v1984 = vld [vmem:[%s2 + $0x70] sm:$0xff]
  %v1985 = vld [vmem:[%s2 + $0x78] sm:$0xff]
  %v1986 = vld [vmem:[%s2 + $0x80] sm:$0xff]
  %v1987 = vld [vmem:[%s2 + $0x88] sm:$0xff]
  %v1988 = vld [vmem:[%s2 + $0x90] sm:$0xff]
  %v1989 = vld [vmem:[%s2 + $0x98] sm:$0xff]
  %v1990 = vld [vmem:[%s2 + $0xa0] sm:$0xff]
  %v1991 = vld [vmem:[%s2 + $0xa8] sm:$0xff]
  %v1992 = vld [vmem:[%s2 + $0xb0] sm:$0xff]
  %v1993 = vld [vmem:[%s2 + $0xb8] sm:$0xff]
  %v1994 = vld [vmem:[%s2 + $0xc0] sm:$0xff]
  %v1995 = vld [vmem:[%s2 + $0xc8] sm:$0xff]
  %v1996 = vld [vmem:[%s2 + $0xd0] sm:$0xff]
  %v1997 = vld [vmem:[%s2 + $0xd8] sm:$0xff]
  %v1998 = vld [vmem:[%s2 + $0xe0] sm:$0xff]
  %v1999 = vld [vmem:[%s2 + $0xe8] sm:$0xff]
  %v2000 = vld [vmem:[%s2 + $0xf0] sm:$0xff]
  %v2001 = vld [vmem:[%s2 + $0xf8] sm:$0xff]
  %v2002 = vld [vmem:[%s2 + $0x100] sm:$0xff]
  %v2003 = vld [vmem:[%s2 + $0x108] sm:$0xff]
  %v2004 = vld [vmem:[%s2 + $0x110] sm:$0xff]
  %v2005 = vld [vmem:[%s2 + $0x118] sm:$0xff]
  %v2006 = vld [vmem:[%s2 + $0x120] sm:$0xff]
  %v2007 = vld [vmem:[%s2 + $0x128] sm:$0xff]
  %v2008 = vld [vmem:[%s2 + $0x130] sm:$0xff]
  %v2009 = vld [vmem:[%s2 + $0x138] sm:$0xff]
  %v2010 = vld [vmem:[%s2 + $0x140] sm:$0xff]
  %v2011 = vld [vmem:[%s2 + $0x148] sm:$0xff]
  %v2012 = vld [vmem:[%s2 + $0x150] sm:$0xff]
  %v2013 = vld [vmem:[%s2 + $0x158] sm:$0xff]
  %v2014 = vld [vmem:[%s2 + $0x160] sm:$0xff]
  %v2015 = vld [vmem:[%s2 + $0x168] sm:$0xff]
  %v2016 = vld [vmem:[%s2 + $0x170] sm:$0xff]
  %v2017 = vld [vmem:[%s2 + $0x178] sm:$0xff]
  %v2018 = vld [vmem:[%s2 + $0x180] sm:$0xff]
  %v2019 = vld [vmem:[%s2 + $0x188] sm:$0xff]
  %v2020 = vld [vmem:[%s2 + $0x190] sm:$0xff]
  %v2021 = vld [vmem:[%s2 + $0x198] sm:$0xff]
  %v2022 = vld [vmem:[%s2 + $0x1a0] sm:$0xff]
  %v2023 = vld [vmem:[%s2 + $0x1a8] sm:$0xff]
  %v2024 = vld [vmem:[%s2 + $0x1b0] sm:$0xff]
  %v2025 = vld [vmem:[%s2 + $0x1b8] sm:$0xff]
  %v2026 = vld [vmem:[%s2 + $0x1c0] sm:$0xff]
  %v2027 = vld [vmem:[%s2 + $0x1c8] sm:$0xff]
  %v2028 = vld [vmem:[%s2 + $0x1d0] sm:$0xff]
  %v2029 = vld [vmem:[%s2 + $0x1d8] sm:$0xff]
  %v2030 = vld [vmem:[%s2 + $0x1e0] sm:$0xff]
  %v2031 = vld [vmem:[%s2 + $0x1e8] sm:$0xff]
  %v2032 = vld [vmem:[%s2 + $0x1f0] sm:$0xff]
  %v2033 = vld [vmem:[%s2 + $0x1f8] sm:$0xff]
  %v2035 = vrot.slane %v1967, 4
  %2037 = vmatprep.subr.mxu0 %v1971
  %2038 = vmatpush1.msra.mxu0 %v1970
  %2039 = vmatprep.subr.mxu0 %v1975
  %2040 = vmatpush1.msra.mxu0 %v1974
  %2041 = vmatprep.subr.mxu0 %v1979
  %2042 = vmatpush1.msra.mxu0 %v1978
  %2043 = vmatprep.subr.mxu0 %v1983
  %2044 = vmatpush1.msra.mxu0 %v1982
  %2045 = vmatprep.subr.mxu0 %v1987
  %2046 = vmatpush1.msra.mxu0 %v1986
  %2047 = vmatprep.subr.mxu0 %v1991
  %2048 = vmatpush1.msra.mxu0 %v1990
  %2049 = vmatprep.subr.mxu0 %v1995
  %2050 = vmatpush1.msra.mxu0 %v1994
  %2051 = vmatprep.subr.mxu0 %v1999
  %2052 = vmatpush1.msra.mxu0 %v1998
  %2053 = vmatprep.subr.mxu0 %v2003
  %2054 = vmatpush1.msra.mxu0 %v2002
  %2055 = vmatprep.subr.mxu0 %v2007
  %2056 = vmatpush1.msra.mxu0 %v2006
  %2057 = vmatprep.subr.mxu0 %v2011
  %2058 = vmatpush1.msra.mxu0 %v2010
  %2059 = vmatprep.subr.mxu0 %v2015
  %2060 = vmatpush1.msra.mxu0 %v2014
  %2061 = vmatprep.subr.mxu0 %v2019
  %2062 = vmatpush1.msra.mxu0 %v2018
  %2063 = vmatprep.subr.mxu0 %v2023
  %2064 = vmatpush1.msra.mxu0 %v2022
  %2065 = vmatprep.subr.mxu0 %v2027
  %2066 = vmatpush1.msra.mxu0 %v2026
  %2067 = vmatprep.subr.mxu0 %v2031
  %2068 = vmatpush1.msra.mxu0 %v2030
  %2069 = vmatprep.subr.mxu0 0.0
  %2070 = vmatpush1.msra.mxu0 0.0
  %2071 = vmatprep.subr.mxu0 0.0
  %2072 = vmatpush1.msra.mxu0 0.0
  %2073 = vmatprep.subr.mxu0 0.0
  %2074 = vmatpush1.msra.mxu0 0.0
  %2075 = vmatprep.subr.mxu0 0.0
  %2076 = vmatpush1.msra.mxu0 0.0
  %2077 = vmatprep.subr.mxu0 0.0
  %2078 = vmatpush1.msra.mxu0 0.0
  %2079 = vmatprep.subr.mxu0 0.0
  %2080 = vmatpush1.msra.mxu0 0.0
  %2081 = vmatprep.subr.mxu0 0.0
  %2082 = vmatpush1.msra.mxu0 0.0
  %2083 = vmatprep.subr.mxu0 0.0
  %2084 = vmatpush1.msra.mxu0 0.0
  %2085 = vmatprep.subr.mxu0 0.0
  %2086 = vmatpush1.msra.mxu0 0.0
  %2087 = vmatprep.subr.mxu0 0.0
  %2088 = vmatpush1.msra.mxu0 0.0
  %2089 = vmatprep.subr.mxu0 0.0
  %2090 = vmatpush1.msra.mxu0 0.0
  %2091 = vmatprep.subr.mxu0 0.0
  %2092 = vmatpush1.msra.mxu0 0.0
  %2093 = vmatprep.subr.mxu0 0.0
  %2094 = vmatpush1.msra.mxu0 0.0
  %2095 = vmatprep.subr.mxu0 0.0
  %2096 = vmatpush1.msra.mxu0 0.0
  %2097 = vmatprep.subr.mxu0 0.0
  %2098 = vmatpush1.msra.mxu0 0.0
  %2099 = vmatprep.subr.mxu0 0.0
  %2100 = vmatpush1.msra.mxu0 0.0
  %2101 = vmatprep.mubr.f32.mxu0 0.0
  %2102 = vmatmul.mubr.f32.gmra.mrb[0].mxu0 %v2035
  %v2103 = vpop.f32.mrb[0].mxu0
  %v2104 = vadd.f32 0.0, %v2103
  %v2105 = vpop.f32.mrb[0].mxu0
  %v2106 = vadd.f32 0.0, %v2105
  %2107 = vdwg.mxu0
  %2108 = vmatprep.subr.mxu0 %v1973
  %2109 = vmatpush1.msra.mxu0 %v1972
  %2110 = vmatprep.subr.mxu0 %v1977
  %2111 = vmatpush1.msra.mxu0 %v1976
  %2112 = vmatprep.subr.mxu0 %v1981
  %2113 = vmatpush1.msra.mxu0 %v1980
  %2114 = vmatprep.subr.mxu0 %v1985
  %2115 = vmatpush1.msra.mxu0 %v1984
  %2116 = vmatprep.subr.mxu0 %v1989
  %2117 = vmatpush1.msra.mxu0 %v1988
  %2118 = vmatprep.subr.mxu0 %v1993
  %2119 = vmatpush1.msra.mxu0 %v1992
  %2120 = vmatprep.subr.mxu0 %v1997
  %2121 = vmatpush1.msra.mxu0 %v1996
  %2122 = vmatprep.subr.mxu0 %v2001
  %2123 = vmatpush1.msra.mxu0 %v2000
  %2124 = vmatprep.subr.mxu0 %v2005
  %2125 = vmatpush1.msra.mxu0 %v2004
  %2126 = vmatprep.subr.mxu0 %v2009
  %2127 = vmatpush1.msra.mxu0 %v2008
  %2128 = vmatprep.subr.mxu0 %v2013
  %2129 = vmatpush1.msra.mxu0 %v2012
  %2130 = vmatprep.subr.mxu0 %v2017
  %2131 = vmatpush1.msra.mxu0 %v2016
  %2132 = vmatprep.subr.mxu0 %v2021
  %2133 = vmatpush1.msra.mxu0 %v2020
  %2134 = vmatprep.subr.mxu0 %v2025
  %2135 = vmatpush1.msra.mxu0 %v2024
  %2136 = vmatprep.subr.mxu0 %v2029
  %2137 = vmatpush1.msra.mxu0 %v2028
  %2138 = vmatprep.subr.mxu0 %v2033
  %2139 = vmatpush1.msra.mxu0 %v2032
  %2140 = vmatprep.subr.mxu0 0.0
  %2141 = vmatpush1.msra.mxu0 0.0
  %2142 = vmatprep.subr.mxu0 0.0
  %2143 = vmatpush1.msra.mxu0 0.0
  %2144 = vmatprep.subr.mxu0 0.0
  %2145 = vmatpush1.msra.mxu0 0.0
  %2146 = vmatprep.subr.mxu0 0.0
  %2147 = vmatpush1.msra.mxu0 0.0
  %2148 = vmatprep.subr.mxu0 0.0
  %2149 = vmatpush1.msra.mxu0 0.0
  %2150 = vmatprep.subr.mxu0 0.0
  %2151 = vmatpush1.msra.mxu0 0.0
  %2152 = vmatprep.subr.mxu0 0.0
  %2153 = vmatpush1.msra.mxu0 0.0
  %2154 = vmatprep.subr.mxu0 0.0
  %2155 = vmatpush1.msra.mxu0 0.0
  %2156 = vmatprep.subr.mxu0 0.0
  %2157 = vmatpush1.msra.mxu0 0.0
  %2158 = vmatprep.subr.mxu0 0.0
  %2159 = vmatpush1.msra.mxu0 0.0
  %2160 = vmatprep.subr.mxu0 0.0
  %2161 = vmatpush1.msra.mxu0 0.0
  %2162 = vmatprep.subr.mxu0 0.0
  %2163 = vmatpush1.msra.mxu0 0.0
  %2164 = vmatprep.subr.mxu0 0.0
  %2165 = vmatpush1.msra.mxu0 0.0
  %2166 = vmatprep.subr.mxu0 0.0
  %2167 = vmatpush1.msra.mxu0 0.0
  %2168 = vmatprep.subr.mxu0 0.0
  %2169 = vmatpush1.msra.mxu0 0.0
  %2170 = vmatprep.subr.mxu0 0.0
  %2171 = vmatpush1.msra.mxu0 0.0
  %2172 = vmatprep.mubr.f32.mxu0 0.0
  %2173 = vmatmul.mubr.f32.gmra.mrb[0].mxu0 %v2035
  %v2174 = vpop.f32.mrb[0].mxu0
  %v2175 = vadd.f32 0.0, %v2174
  %v2176 = vpop.f32.mrb[0].mxu0
  %v2177 = vadd.f32 0.0, %v2176
  %2178 = vdwg.mxu0
  %v2183 = vrot.slane %v2104, 2
  %v2184 = vrot.slane %v2106, 2
  %v2185 = vrot.slane %v2175, 2
  %v2186 = vrot.slane %v2177, 2
  %v2191 = vadd.f32 %v188, %v2183
  %v2192 = vadd.f32 %v190, %v2184
  %v2193 = vadd.f32 %v265, %v2185
  %v2194 = vadd.f32 %v267, %v2186
  %v2195 = vmul.f32 %v2191, 0.5
  %v2196 = vtanh.pop %v2195
  %v2197 = vmul.f32 %v2196, 0.5
  %v2198 = vadd.f32 %v2197, 0.5
  %v2199 = vmul.f32 %v2192, 0.5
  %v2200 = vtanh.pop %v2199
  %v2201 = vmul.f32 %v2200, 0.5
  %v2202 = vadd.f32 %v2201, 0.5
  %v2203 = vtanh.pop %v2193
  %v2204 = vmul.f32 %v2194, 0.5
  %v2205 = vtanh.pop %v2204
  %v2206 = vmul.f32 %v2205, 0.5
  %v2207 = vadd.f32 %v2206, 0.5
  %v2209 = vrot.slane %v1965, 6
  %v2211 = vmul.f32 %v2202, %v2209
  %v2212 = vmul.f32 %v2198, %v2203
  %v2213 = vadd.f32 %v2211, %v2212
  %v2214 = vtanh.pop %v2213
  %v2215 = vmul.f32 %v2207, %v2214
  %s2216 = scalar_lea.vmem %s4, 14
  %2217 = vst [vmem:[%s2216 - $0x6] sm:$0xc0] %v2215
  %2218 = vst [vmem:[#allocation2 - $0x6] sm:$0xc0] %v2215
  %2219 = vst [vmem:[#allocation3 - $0x6] sm:$0xc0] %v2213
  // Predicated region
  $region22: #{lstm_block_pallas.1} parent=0 // pred_check
    _
  $region23: #{lstm_block_pallas.1} parent=0 // pred_check_branch
    %2221 = sbr.rel (0) target = $region25
  $region24: #{lstm_block_pallas.1} parent=0 // pred_region
    _
  $region25: #{lstm_block_pallas.1} parent=0 // pred_fallthru
    _
  // Predicated region
  $region26: #{lstm_block_pallas.1} parent=0 // pred_check
    _
  $region27: #{lstm_block_pallas.1} parent=0 // pred_check_branch
    %2223 = sbr.rel (0) target = $region29
  $region28: #{lstm_block_pallas.1} parent=0 // pred_region
    _
  $region29: #{lstm_block_pallas.1} parent=0 // pred_fallthru
    _

</llo_original>
